<compile_context>
chip_gen: v7x
topology: tpu7x:2x2x1
jax: 0.10.0
libtpu: 0.0.40
codegen_flags: <defaults>
</compile_context>

<pallas_src>
import math

import jax
import jax.numpy as jnp
from jax import lax
from jax.experimental import pallas as pl
from jax.experimental.pallas import tpu as pltpu

_CHUNK = 8  # sublane granularity of the unrolled recurrence inner loop


def _round_up(x, m):
    return (x + m - 1) // m * m


def _padded_input_dim(embedding_size, hidden_size):
    # Lane-dense layer-input width shared by the wrapper and init_params.
    return _round_up(max(embedding_size, hidden_size), 128)


def _lstm_stack_kernel(x_hbm_ref, w_ih_ref, w_hh_ref, b_ref,
                       out_ref, h_ref, c_ref, gates_ref):
    layer = pl.program_id(0)
    T, D = out_ref.shape
    H = h_ref.shape[-1]
    H_pad = _round_up(H, 128)

    # Seed the resident (T, D) output block with the embedded tokens exactly once.
    # x lives in HBM (pl.ANY): no double-buffered VMEM input block, one DMA total.
    @pl.when(layer == 0)
    def _():
        pltpu.sync_copy(x_hbm_ref, out_ref)

    w_hh = w_hh_ref[0]                                                   # (H, 4H)

    # Hoisted input-to-gates matmul for all timesteps (single MXU hot op per layer),
    # staged in VMEM scratch.  Layers >= 1 only carry meaningful input in columns
    # [0:H]; when D > H_pad contract over H_pad only (rows [H:H_pad] of w_ih are
    # structurally zero -- guaranteed by init_params' zero-padded weight stack).
    if D > H_pad:
        @pl.when(layer == 0)
        def _():
            gates_ref[...] = (
                jnp.dot(out_ref[...], w_ih_ref[0],
                        preferred_element_type=jnp.float32) + b_ref[0])

        @pl.when(layer > 0)
        def _():
            gates_ref[...] = (
                jnp.dot(out_ref[:, :H_pad], w_ih_ref[0, :H_pad, :],
                        preferred_element_type=jnp.float32) + b_ref[0])
    else:
        gates_ref[...] = (
            jnp.dot(out_ref[...], w_ih_ref[0],
                    preferred_element_type=jnp.float32) + b_ref[0])

    def lstm_cell(g_row, h, c):
        # g_row: (1, 4H) input contribution for one timestep.
        # TODO(synk): hold w_hh resident in the MXU across the time loop
        # (pltpu.matmul_push_rhs / matmul_acc_lhs / matmul_pop) to avoid re-issuing the
        # weight tile every step.
        g = g_row + jnp.dot(h, w_hh, preferred_element_type=jnp.float32)  # (1, 4H)
        # Gate order (PyTorch): i, f, g, o.  Slice BEFORE the transcendentals so only
        # 4H lanes of EUP work sit on the serial per-step chain (was 8H).
        s_if = jax.nn.sigmoid(g[:, 0:2 * H])          # i, f
        o = jax.nn.sigmoid(g[:, 3 * H:4 * H])         # o
        gg = jnp.tanh(g[:, 2 * H:3 * H])              # g
        i = s_if[:, 0:H]
        f = s_if[:, H:2 * H]
        c_new = f * c + i * gg
        h_new = o * jnp.tanh(c_new)
        return h_new, c_new

    n_chunks = T // _CHUNK
    rem = T % _CHUNK

    h0 = jnp.zeros((1, H), jnp.float32)
    c0 = jnp.zeros((1, H), jnp.float32)

    def chunk_body(ci, carry):
        h, c = carry
        base = pl.multiple_of(ci * _CHUNK, _CHUNK)
        for t in range(_CHUNK):                        # static unroll
            # Per-row VMEM load (vld slot, can issue ahead of the h->h chain) instead of
            # extracting sublanes from a live register block.
            g_row = gates_ref[pl.ds(base + t, 1), :]
            h, c = lstm_cell(g_row, h, c)
            # Store each hidden row as it is produced: stores are off the dependence chain
            # and the vst slot is idle, so no concatenate / sublane-pack epilogue.
            out_ref[pl.ds(base + t, 1), 0:H] = h
        return h, c

    if n_chunks > 0:
        unroll = True if n_chunks <= 8 else 8
        h_fin, c_fin = lax.fori_loop(0, n_chunks, chunk_body, (h0, c0),
                                     unroll=unroll)
    else:
        h_fin, c_fin = h0, c0

    # Remainder timesteps (T not a multiple of 8): static indices, single-row stores.
    for t in range(rem):
        idx = n_chunks * _CHUNK + t
        g_row = gates_ref[pl.ds(idx, 1), :]
        h_fin, c_fin = lstm_cell(g_row, h_fin, c_fin)
        out_ref[pl.ds(idx, 1), 0:H] = h_fin

    h_ref[...] = h_fin.reshape(1, 1, H)
    c_ref[...] = c_fin.reshape(1, 1, H)


def seq_encoder_forward(tokens, params, *, hidden_size, num_layers, attention=True):
    emb_pad = params["embedding_pad"]               # (vocab, D) padded once at init
    D = emb_pad.shape[1]
    H, L = hidden_size, num_layers
    T = tokens.shape[0]

    # nn.Embedding gather (wrapper glue); already lane-padded, no extra zeros+set copy.
    x_pad = jnp.take(emb_pad, tokens, axis=0)       # (T, D)

    w_ih_t = params["w_ih_t"]                       # (L, D, 4H)
    w_hh_t = params["w_hh_t"]                       # (L, H, 4H)
    b = params["b"]                                 # (L, 1, 4H)

    # Explicit VMEM budget (review item): resident out block + double-buffered weight/bias
    # blocks + gates scratch (+ small tile-padded h/c blocks), 2x margin.  x stays in HBM.
    vmem_bytes = 4 * (
        T * D                       # resident (T, D) output block
        + 2 * D * 4 * H             # double-buffered w_ih block
        + 2 * H * 4 * H             # double-buffered w_hh block
        + 2 * 8 * 4 * H             # bias block (sublane padded)
        + T * 4 * H                 # gates scratch
        + 8 * 8 * 128               # h/c output blocks (tile padded, double-buffered)
    )
    vmem_limit = int(min(64 * 1024 * 1024,                     # v7x-safe ceiling
                         max(2 * vmem_bytes, 16 * 1024 * 1024)))

    grid_spec = pltpu.PrefetchScalarGridSpec(
        num_scalar_prefetch=0,
        grid=(L,),
        in_specs=[
            pl.BlockSpec(memory_space=pl.ANY),                 # x stays in HBM; DMA'd once
            pl.BlockSpec((1, D, 4 * H), lambda l: (l, 0, 0)),
            pl.BlockSpec((1, H, 4 * H), lambda l: (l, 0, 0)),
            pl.BlockSpec((1, 1, 4 * H), lambda l: (l, 0, 0)),
        ],
        out_specs=[
            pl.BlockSpec((T, D), lambda l: (0, 0)),            # resident across the layer grid
            pl.BlockSpec((1, 1, H), lambda l: (l, 0, 0)),
            pl.BlockSpec((1, 1, H), lambda l: (l, 0, 0)),
        ],
        # TODO(synk): for very long T, chunk + double-buffer this staging scratch so the
        # gates matmul overlaps the recurrence and VMEM stays bounded.
        scratch_shapes=[pltpu.VMEM((T, 4 * H), jnp.float32)],
    )
    outputs, hiddens, cells = pl.pallas_call(
        _lstm_stack_kernel,
        out_shape=(
            jax.ShapeDtypeStruct((T, D), jnp.float32),
            jax.ShapeDtypeStruct((L, 1, H), jnp.float32),
            jax.ShapeDtypeStruct((L, 1, H), jnp.float32),
        ),
        grid_spec=grid_spec,
        compiler_params=pltpu.CompilerParams(
            dimension_semantics=("arbitrary",),
            vmem_limit_bytes=vmem_limit,
        ),
    )(x_pad, w_ih_t, w_hh_t, b)

    outputs = outputs[:, :H]        # (T, H)   == LSTM outputs.squeeze(1)
    hiddens = hiddens[:, 0, :]      # (L, H)   == h_n.squeeze(1)
    cells = cells[:, 0, :]          # (L, H)   == c_n.squeeze(1)
    if attention:
        return outputs, hiddens, cells
    return hiddens, cells


def init_params(key, input_size, hidden_size, num_layers, embedding_size):
    H, L, E = hidden_size, num_layers, embedding_size
    D = _padded_input_dim(E, H)
    k = 1.0 / math.sqrt(float(H))
    keys = jax.random.split(key, 1 + 4 * L)
    embedding = jax.random.normal(keys[0], (input_size, E), jnp.float32)
    # Pad the embedding table once so the wrapper's gather yields (T, D) directly.
    embedding_pad = jnp.zeros((input_size, D), jnp.float32).at[:, :E].set(embedding)

    # NOTE: correctness of the in-place layer stacking relies on rows [in_dim:D] of w_ih_t
    # being zero for every layer (layer >= 1 input occupies only columns [0:H] of the
    # resident block; the rest holds stale embedding values).
    w_ih_t = jnp.zeros((L, D, 4 * H), jnp.float32)
    w_hh_t = jnp.zeros((L, H, 4 * H), jnp.float32)
    b = jnp.zeros((L, 1, 4 * H), jnp.float32)
    per_layer = []
    for l in range(L):
        in_dim = E if l == 0 else H
        kw = keys[1 + 4 * l:1 + 4 * (l + 1)]
        w_ih = jax.random.uniform(kw[0], (4 * H, in_dim), jnp.float32, -k, k)
        w_hh = jax.random.uniform(kw[1], (4 * H, H), jnp.float32, -k, k)
        b_ih = jax.random.uniform(kw[2], (4 * H,), jnp.float32, -k, k)
        b_hh = jax.random.uniform(kw[3], (4 * H,), jnp.float32, -k, k)
        w_ih_t = w_ih_t.at[l, :in_dim, :].set(w_ih.T)
        w_hh_t = w_hh_t.at[l].set(w_hh.T)
        b = b.at[l, 0].set(b_ih + b_hh)
        per_layer.append((w_ih, w_hh, b_ih + b_hh))
    return {"embedding": embedding, "embedding_pad": embedding_pad,
            "w_ih_t": w_ih_t, "w_hh_t": w_hh_t, "b": b, "per_layer": per_layer}


def lstm_reference(tokens, params, hidden_size, num_layers):
    """Pure-JAX reference matching torch.nn.LSTM semantics (batch=1)."""
    H, L = hidden_size, num_layers
    inp = jnp.take(params["embedding"], tokens, axis=0)
    hs, cs = [], []
    for l in range(L):
        w_ih, w_hh, bias = params["per_layer"][l]
        h = jnp.zeros((H,), jnp.float32)
        c = jnp.zeros((H,), jnp.float32)
        outs = []
        for t in range(inp.shape[0]):
            g = w_ih @ inp[t] + w_hh @ h + bias
            i = jax.nn.sigmoid(g[0:H])
            f = jax.nn.sigmoid(g[H:2 * H])
            gg = jnp.tanh(g[2 * H:3 * H])
            o = jax.nn.sigmoid(g[3 * H:4 * H])
            c = f * c + i * gg
            h = o * jnp.tanh(c)
            outs.append(h)
        inp = jnp.stack(outs)
        hs.append(h)
        cs.append(c)
    return inp, jnp.stack(hs), jnp.stack(cs)


if __name__ == "__main__":
    def run_case(input_size, embedding_size, hidden_size, num_layers, seq_len, case_id):
        key = jax.random.fold_in(jax.random.PRNGKey(0), case_id)
        k_params, k_tok = jax.random.split(key)
        params = init_params(k_params, input_size, hidden_size, num_layers, embedding_size)
        tokens = jax.random.randint(k_tok, (seq_len,), 0, input_size, dtype=jnp.int32)

        outputs, hiddens, cells = seq_encoder_forward(
            tokens, params, hidden_size=hidden_size, num_layers=num_layers, attention=True)
        jax.block_until_ready((outputs, hiddens, cells))

        ro, rh, rc = lstm_reference(tokens, params, hidden_size, num_layers)
        assert outputs.shape == (seq_len, hidden_size)
        assert hiddens.shape == (num_layers, hidden_size)
        assert cells.shape == (num_layers, hidden_size)
        # Tolerance sized to cover possible bf16-pass MXU lowering of the f32 matmuls on
        # both the kernel and the pure-JAX reference; structural bugs give O(1) errors.
        tol = 2e-2
        assert jnp.allclose(outputs, ro, atol=tol, rtol=tol)
        assert jnp.allclose(hiddens, rh, atol=tol, rtol=tol)
        assert jnp.allclose(cells, rc, atol=tol, rtol=tol)

    # Small shapes consistent with the module: vocab=50, emb=40, hidden=32, layers=2, seq=8.
    run_case(50, 40, 32, 2, 8, 0)
    # Exercise the multi-chunk + remainder recurrence path (T=21 -> 2 chunks + 5 remainder).
    run_case(50, 40, 32, 2, 21, 1)
    # Exercise the wide-embedding path where layers >= 1 contract over H_pad < D.
    run_case(50, 192, 32, 2, 12, 2)

    print("KERNEL_OK")
</pallas_src>

<mosaic_0001>
module attributes {stable_mosaic.version = 11 : i64} {
  func.func @_lstm_stack_kernel(%arg0: i32, %arg1: memref<8x128xf32, #tpu.memory_space<any>>, %arg2: memref<1x128x128xf32, #tpu.memory_space<vmem>>, %arg3: memref<1x32x128xf32, #tpu.memory_space<vmem>>, %arg4: memref<1x1x128xf32, #tpu.memory_space<vmem>>, %arg5: memref<8x128xf32, #tpu.memory_space<vmem>>, %arg6: memref<1x1x32xf32, #tpu.memory_space<vmem>>, %arg7: memref<1x1x32xf32, #tpu.memory_space<vmem>>, %arg8: memref<8x128xf32, #tpu.memory_space<vmem>>) attributes {dimension_semantics = [#tpu.dimension_semantics<arbitrary>], iteration_bounds = array<i64: 2>, scalar_prefetch = 0 : i64, scratch_operands = 1 : i64, tpu.core_type = #tpu.core_type<tc>, window_params = [{}, {transform_indices = @transform_1, window_bounds = array<i64: 1, 128, 128>}, {transform_indices = @transform_2, window_bounds = array<i64: 1, 32, 128>}, {transform_indices = @transform_3, window_bounds = array<i64: 1, 1, 128>}, {pipeline_mode = #tpu.pipeline_mode<synchronous>, transform_indices = @transform_4, window_bounds = array<i64: 8, 128>}, {transform_indices = @transform_5, window_bounds = array<i64: 1, 1, 32>}, {transform_indices = @transform_6, window_bounds = array<i64: 1, 1, 32>}]} {
    %c0_i32 = arith.constant 0 : i32
    %0 = arith.cmpi eq, %arg0, %c0_i32 : i32
    %1 = arith.extui %0 : i1 to i32
    %c0_i32_0 = arith.constant 0 : i32
    %2 = arith.cmpi ne, %1, %c0_i32_0 : i32
    scf.if %2 {
      "tpu.region"() ({
        %254 = tpu.sem_alloc : memref<!tpu.dma_semaphore, #tpu.memory_space<semaphore_mem>>
        tpu.enqueue_dma source(%arg1 : memref<8x128xf32, #tpu.memory_space<any>>) target(%arg5 : memref<8x128xf32, #tpu.memory_space<vmem>>) target_semaphore(%254 : memref<!tpu.dma_semaphore, #tpu.memory_space<semaphore_mem>>)
        tpu.wait_dma2 semaphore(%254 : memref<!tpu.dma_semaphore, #tpu.memory_space<semaphore_mem>>) src(%arg1 : memref<8x128xf32, #tpu.memory_space<any>>) dst(%arg5 : memref<8x128xf32, #tpu.memory_space<vmem>>)
        tpu.yield
      }) : () -> ()
    } else {
    }
    %c0 = arith.constant 0 : index
    %c0_1 = arith.constant 0 : index
    %c0_2 = arith.constant 0 : index
    %3 = vector.load %arg3[%c0, %c0_1, %c0_2] : memref<1x32x128xf32, #tpu.memory_space<vmem>>, vector<1x32x128xf32>
    %4 = vector.shape_cast %3 : vector<1x32x128xf32> to vector<32x128xf32>
    %c0_3 = arith.constant 0 : index
    %c0_4 = arith.constant 0 : index
    %5 = vector.load %arg5[%c0_3, %c0_4] : memref<8x128xf32, #tpu.memory_space<vmem>>, vector<8x128xf32>
    %c0_5 = arith.constant 0 : index
    %c0_6 = arith.constant 0 : index
    %c0_7 = arith.constant 0 : index
    %6 = vector.load %arg2[%c0_5, %c0_6, %c0_7] : memref<1x128x128xf32, #tpu.memory_space<vmem>>, vector<1x128x128xf32>
    %7 = vector.shape_cast %6 : vector<1x128x128xf32> to vector<128x128xf32>
    %cst = arith.constant dense<0.000000e+00> : vector<8x128xf32>
    %8 = tpu.matmul %5, %7, %cst {dimension_numbers = #tpu.dot_dimension_numbers<[1], [0], [0], [1], [0, 0, 1, 1], [], []>} : vector<8x128xf32>, vector<128x128xf32>, vector<8x128xf32> -> vector<8x128xf32>
    %c0_8 = arith.constant 0 : index
    %c0_9 = arith.constant 0 : index
    %c0_10 = arith.constant 0 : index
    %9 = vector.load %arg4[%c0_8, %c0_9, %c0_10] : memref<1x1x128xf32, #tpu.memory_space<vmem>>, vector<1x1x128xf32>
    %10 = vector.shape_cast %9 : vector<1x1x128xf32> to vector<1x128xf32>
    %11 = vector.broadcast %10 : vector<1x128xf32> to vector<8x128xf32>
    %12 = arith.addf %8, %11 : vector<8x128xf32>
    %c0_11 = arith.constant 0 : index
    %c0_12 = arith.constant 0 : index
    %13 = vector.load %arg8[%c0_11, %c0_12] : memref<8x128xf32, #tpu.memory_space<vmem>>, vector<8x128xf32>
    tpu.vector_store %arg8[%c0_11, %c0_12], %12 {strides = array<i32>} : memref<8x128xf32, #tpu.memory_space<vmem>>, vector<8x128xf32>,
    %cst_13 = arith.constant 0.000000e+00 : f32
    %14 = vector.broadcast %cst_13 : f32 to vector<1x32xf32>
    %cst_14 = arith.constant 0.000000e+00 : f32
    %15 = vector.broadcast %cst_14 : f32 to vector<1x32xf32>
    %c0_i32_15 = arith.constant 0 : i32
    %c8_i32 = arith.constant 8 : i32
    %16 = arith.muli %c0_i32_15, %c8_i32 : i32
    %17 = tpu.assume_multiple %16, 8 : i32
    %c0_i32_16 = arith.constant 0 : i32
    %18 = arith.addi %17, %c0_i32_16 : i32
    %19 = arith.index_cast %18 : i32 to index
    %c0_17 = arith.constant 0 : index
    %20 = vector.load %arg8[%19, %c0_17] : memref<8x128xf32, #tpu.memory_space<vmem>>, vector<1x128xf32>
    %cst_18 = arith.constant dense<0.000000e+00> : vector<1x128xf32>
    %21 = tpu.matmul %14, %4, %cst_18 {dimension_numbers = #tpu.dot_dimension_numbers<[1], [0], [0], [1], [0, 0, 1, 1], [], []>} : vector<1x32xf32>, vector<32x128xf32>, vector<1x128xf32> -> vector<1x128xf32>
    %22 = arith.addf %20, %21 : vector<1x128xf32>
    %23 = vector.extract_strided_slice %22 {offsets = [0, 0], sizes = [1, 64], strides = [1, 1]} : vector<1x128xf32> to vector<1x64xf32>
    %24 = arith.negf %23 : vector<1x64xf32>
    %25 = math.exp %24 : vector<1x64xf32>
    %cst_19 = arith.constant 1.000000e+00 : f32
    %26 = vector.broadcast %cst_19 : f32 to vector<1x64xf32>
    %27 = arith.addf %26, %25 : vector<1x64xf32>
    %28 = arith.divf %26, %27 : vector<1x64xf32>
    %29 = vector.extract_strided_slice %22 {offsets = [0, 96], sizes = [1, 32], strides = [1, 1]} : vector<1x128xf32> to vector<1x32xf32>
    %30 = arith.negf %29 : vector<1x32xf32>
    %31 = math.exp %30 : vector<1x32xf32>
    %cst_20 = arith.constant 1.000000e+00 : f32
    %32 = vector.broadcast %cst_20 : f32 to vector<1x32xf32>
    %33 = arith.addf %32, %31 : vector<1x32xf32>
    %34 = arith.divf %32, %33 : vector<1x32xf32>
    %35 = vector.extract_strided_slice %22 {offsets = [0, 64], sizes = [1, 32], strides = [1, 1]} : vector<1x128xf32> to vector<1x32xf32>
    %36 = math.tanh %35 : vector<1x32xf32>
    %37 = vector.extract_strided_slice %28 {offsets = [0, 0], sizes = [1, 32], strides = [1, 1]} : vector<1x64xf32> to vector<1x32xf32>
    %38 = vector.extract_strided_slice %28 {offsets = [0, 32], sizes = [1, 32], strides = [1, 1]} : vector<1x64xf32> to vector<1x32xf32>
    %39 = arith.mulf %38, %15 : vector<1x32xf32>
    %40 = arith.mulf %37, %36 : vector<1x32xf32>
    %41 = arith.addf %39, %40 : vector<1x32xf32>
    %42 = math.tanh %41 : vector<1x32xf32>
    %43 = arith.mulf %34, %42 : vector<1x32xf32>
    %c0_i32_21 = arith.constant 0 : i32
    %44 = arith.addi %17, %c0_i32_21 : i32
    %45 = arith.index_cast %44 : i32 to index
    %c0_22 = arith.constant 0 : index
    %46 = vector.load %arg5[%45, %c0_22] : memref<8x128xf32, #tpu.memory_space<vmem>>, vector<1x32xf32>
    tpu.vector_store %arg5[%45, %c0_22], %43 {strides = array<i32>} : memref<8x128xf32, #tpu.memory_space<vmem>>, vector<1x32xf32>,
    %c1_i32 = arith.constant 1 : i32
    %47 = arith.addi %17, %c1_i32 : i32
    %48 = arith.index_cast %47 : i32 to index
    %c0_23 = arith.constant 0 : index
    %49 = vector.load %arg8[%48, %c0_23] : memref<8x128xf32, #tpu.memory_space<vmem>>, vector<1x128xf32>
    %cst_24 = arith.constant dense<0.000000e+00> : vector<1x128xf32>
    %50 = tpu.matmul %43, %4, %cst_24 {dimension_numbers = #tpu.dot_dimension_numbers<[1], [0], [0], [1], [0, 0, 1, 1], [], []>} : vector<1x32xf32>, vector<32x128xf32>, vector<1x128xf32> -> vector<1x128xf32>
    %51 = arith.addf %49, %50 : vector<1x128xf32>
    %52 = vector.extract_strided_slice %51 {offsets = [0, 0], sizes = [1, 64], strides = [1, 1]} : vector<1x128xf32> to vector<1x64xf32>
    %53 = arith.negf %52 : vector<1x64xf32>
    %54 = math.exp %53 : vector<1x64xf32>
    %cst_25 = arith.constant 1.000000e+00 : f32
    %55 = vector.broadcast %cst_25 : f32 to vector<1x64xf32>
    %56 = arith.addf %55, %54 : vector<1x64xf32>
    %57 = arith.divf %55, %56 : vector<1x64xf32>
    %58 = vector.extract_strided_slice %51 {offsets = [0, 96], sizes = [1, 32], strides = [1, 1]} : vector<1x128xf32> to vector<1x32xf32>
    %59 = arith.negf %58 : vector<1x32xf32>
    %60 = math.exp %59 : vector<1x32xf32>
    %cst_26 = arith.constant 1.000000e+00 : f32
    %61 = vector.broadcast %cst_26 : f32 to vector<1x32xf32>
    %62 = arith.addf %61, %60 : vector<1x32xf32>
    %63 = arith.divf %61, %62 : vector<1x32xf32>
    %64 = vector.extract_strided_slice %51 {offsets = [0, 64], sizes = [1, 32], strides = [1, 1]} : vector<1x128xf32> to vector<1x32xf32>
    %65 = math.tanh %64 : vector<1x32xf32>
    %66 = vector.extract_strided_slice %57 {offsets = [0, 0], sizes = [1, 32], strides = [1, 1]} : vector<1x64xf32> to vector<1x32xf32>
    %67 = vector.extract_strided_slice %57 {offsets = [0, 32], sizes = [1, 32], strides = [1, 1]} : vector<1x64xf32> to vector<1x32xf32>
    %68 = arith.mulf %67, %41 : vector<1x32xf32>
    %69 = arith.mulf %66, %65 : vector<1x32xf32>
    %70 = arith.addf %68, %69 : vector<1x32xf32>
    %71 = math.tanh %70 : vector<1x32xf32>
    %72 = arith.mulf %63, %71 : vector<1x32xf32>
    %c1_i32_27 = arith.constant 1 : i32
    %73 = arith.addi %17, %c1_i32_27 : i32
    %74 = arith.index_cast %73 : i32 to index
    %c0_28 = arith.constant 0 : index
    %75 = vector.load %arg5[%74, %c0_28] : memref<8x128xf32, #tpu.memory_space<vmem>>, vector<1x32xf32>
    tpu.vector_store %arg5[%74, %c0_28], %72 {strides = array<i32>} : memref<8x128xf32, #tpu.memory_space<vmem>>, vector<1x32xf32>,
    %c2_i32 = arith.constant 2 : i32
    %76 = arith.addi %17, %c2_i32 : i32
    %77 = arith.index_cast %76 : i32 to index
    %c0_29 = arith.constant 0 : index
    %78 = vector.load %arg8[%77, %c0_29] : memref<8x128xf32, #tpu.memory_space<vmem>>, vector<1x128xf32>
    %cst_30 = arith.constant dense<0.000000e+00> : vector<1x128xf32>
    %79 = tpu.matmul %72, %4, %cst_30 {dimension_numbers = #tpu.dot_dimension_numbers<[1], [0], [0], [1], [0, 0, 1, 1], [], []>} : vector<1x32xf32>, vector<32x128xf32>, vector<1x128xf32> -> vector<1x128xf32>
    %80 = arith.addf %78, %79 : vector<1x128xf32>
    %81 = vector.extract_strided_slice %80 {offsets = [0, 0], sizes = [1, 64], strides = [1, 1]} : vector<1x128xf32> to vector<1x64xf32>
    %82 = arith.negf %81 : vector<1x64xf32>
    %83 = math.exp %82 : vector<1x64xf32>
    %cst_31 = arith.constant 1.000000e+00 : f32
    %84 = vector.broadcast %cst_31 : f32 to vector<1x64xf32>
    %85 = arith.addf %84, %83 : vector<1x64xf32>
    %86 = arith.divf %84, %85 : vector<1x64xf32>
    %87 = vector.extract_strided_slice %80 {offsets = [0, 96], sizes = [1, 32], strides = [1, 1]} : vector<1x128xf32> to vector<1x32xf32>
    %88 = arith.negf %87 : vector<1x32xf32>
    %89 = math.exp %88 : vector<1x32xf32>
    %cst_32 = arith.constant 1.000000e+00 : f32
    %90 = vector.broadcast %cst_32 : f32 to vector<1x32xf32>
    %91 = arith.addf %90, %89 : vector<1x32xf32>
    %92 = arith.divf %90, %91 : vector<1x32xf32>
    %93 = vector.extract_strided_slice %80 {offsets = [0, 64], sizes = [1, 32], strides = [1, 1]} : vector<1x128xf32> to vector<1x32xf32>
    %94 = math.tanh %93 : vector<1x32xf32>
    %95 = vector.extract_strided_slice %86 {offsets = [0, 0], sizes = [1, 32], strides = [1, 1]} : vector<1x64xf32> to vector<1x32xf32>
    %96 = vector.extract_strided_slice %86 {offsets = [0, 32], sizes = [1, 32], strides = [1, 1]} : vector<1x64xf32> to vector<1x32xf32>
    %97 = arith.mulf %96, %70 : vector<1x32xf32>
    %98 = arith.mulf %95, %94 : vector<1x32xf32>
    %99 = arith.addf %97, %98 : vector<1x32xf32>
    %100 = math.tanh %99 : vector<1x32xf32>
    %101 = arith.mulf %92, %100 : vector<1x32xf32>
    %c2_i32_33 = arith.constant 2 : i32
    %102 = arith.addi %17, %c2_i32_33 : i32
    %103 = arith.index_cast %102 : i32 to index
    %c0_34 = arith.constant 0 : index
    %104 = vector.load %arg5[%103, %c0_34] : memref<8x128xf32, #tpu.memory_space<vmem>>, vector<1x32xf32>
    tpu.vector_store %arg5[%103, %c0_34], %101 {strides = array<i32>} : memref<8x128xf32, #tpu.memory_space<vmem>>, vector<1x32xf32>,
    %c3_i32 = arith.constant 3 : i32
    %105 = arith.addi %17, %c3_i32 : i32
    %106 = arith.index_cast %105 : i32 to index
    %c0_35 = arith.constant 0 : index
    %107 = vector.load %arg8[%106, %c0_35] : memref<8x128xf32, #tpu.memory_space<vmem>>, vector<1x128xf32>
    %cst_36 = arith.constant dense<0.000000e+00> : vector<1x128xf32>
    %108 = tpu.matmul %101, %4, %cst_36 {dimension_numbers = #tpu.dot_dimension_numbers<[1], [0], [0], [1], [0, 0, 1, 1], [], []>} : vector<1x32xf32>, vector<32x128xf32>, vector<1x128xf32> -> vector<1x128xf32>
    %109 = arith.addf %107, %108 : vector<1x128xf32>
    %110 = vector.extract_strided_slice %109 {offsets = [0, 0], sizes = [1, 64], strides = [1, 1]} : vector<1x128xf32> to vector<1x64xf32>
    %111 = arith.negf %110 : vector<1x64xf32>
    %112 = math.exp %111 : vector<1x64xf32>
    %cst_37 = arith.constant 1.000000e+00 : f32
    %113 = vector.broadcast %cst_37 : f32 to vector<1x64xf32>
    %114 = arith.addf %113, %112 : vector<1x64xf32>
    %115 = arith.divf %113, %114 : vector<1x64xf32>
    %116 = vector.extract_strided_slice %109 {offsets = [0, 96], sizes = [1, 32], strides = [1, 1]} : vector<1x128xf32> to vector<1x32xf32>
    %117 = arith.negf %116 : vector<1x32xf32>
    %118 = math.exp %117 : vector<1x32xf32>
    %cst_38 = arith.constant 1.000000e+00 : f32
    %119 = vector.broadcast %cst_38 : f32 to vector<1x32xf32>
    %120 = arith.addf %119, %118 : vector<1x32xf32>
    %121 = arith.divf %119, %120 : vector<1x32xf32>
    %122 = vector.extract_strided_slice %109 {offsets = [0, 64], sizes = [1, 32], strides = [1, 1]} : vector<1x128xf32> to vector<1x32xf32>
    %123 = math.tanh %122 : vector<1x32xf32>
    %124 = vector.extract_strided_slice %115 {offsets = [0, 0], sizes = [1, 32], strides = [1, 1]} : vector<1x64xf32> to vector<1x32xf32>
    %125 = vector.extract_strided_slice %115 {offsets = [0, 32], sizes = [1, 32], strides = [1, 1]} : vector<1x64xf32> to vector<1x32xf32>
    %126 = arith.mulf %125, %99 : vector<1x32xf32>
    %127 = arith.mulf %124, %123 : vector<1x32xf32>
    %128 = arith.addf %126, %127 : vector<1x32xf32>
    %129 = math.tanh %128 : vector<1x32xf32>
    %130 = arith.mulf %121, %129 : vector<1x32xf32>
    %c3_i32_39 = arith.constant 3 : i32
    %131 = arith.addi %17, %c3_i32_39 : i32
    %132 = arith.index_cast %131 : i32 to index
    %c0_40 = arith.constant 0 : index
    %133 = vector.load %arg5[%132, %c0_40] : memref<8x128xf32, #tpu.memory_space<vmem>>, vector<1x32xf32>
    tpu.vector_store %arg5[%132, %c0_40], %130 {strides = array<i32>} : memref<8x128xf32, #tpu.memory_space<vmem>>, vector<1x32xf32>,
    %c4_i32 = arith.constant 4 : i32
    %134 = arith.addi %17, %c4_i32 : i32
    %135 = arith.index_cast %134 : i32 to index
    %c0_41 = arith.constant 0 : index
    %136 = vector.load %arg8[%135, %c0_41] : memref<8x128xf32, #tpu.memory_space<vmem>>, vector<1x128xf32>
    %cst_42 = arith.constant dense<0.000000e+00> : vector<1x128xf32>
    %137 = tpu.matmul %130, %4, %cst_42 {dimension_numbers = #tpu.dot_dimension_numbers<[1], [0], [0], [1], [0, 0, 1, 1], [], []>} : vector<1x32xf32>, vector<32x128xf32>, vector<1x128xf32> -> vector<1x128xf32>
    %138 = arith.addf %136, %137 : vector<1x128xf32>
    %139 = vector.extract_strided_slice %138 {offsets = [0, 0], sizes = [1, 64], strides = [1, 1]} : vector<1x128xf32> to vector<1x64xf32>
    %140 = arith.negf %139 : vector<1x64xf32>
    %141 = math.exp %140 : vector<1x64xf32>
    %cst_43 = arith.constant 1.000000e+00 : f32
    %142 = vector.broadcast %cst_43 : f32 to vector<1x64xf32>
    %143 = arith.addf %142, %141 : vector<1x64xf32>
    %144 = arith.divf %142, %143 : vector<1x64xf32>
    %145 = vector.extract_strided_slice %138 {offsets = [0, 96], sizes = [1, 32], strides = [1, 1]} : vector<1x128xf32> to vector<1x32xf32>
    %146 = arith.negf %145 : vector<1x32xf32>
    %147 = math.exp %146 : vector<1x32xf32>
    %cst_44 = arith.constant 1.000000e+00 : f32
    %148 = vector.broadcast %cst_44 : f32 to vector<1x32xf32>
    %149 = arith.addf %148, %147 : vector<1x32xf32>
    %150 = arith.divf %148, %149 : vector<1x32xf32>
    %151 = vector.extract_strided_slice %138 {offsets = [0, 64], sizes = [1, 32], strides = [1, 1]} : vector<1x128xf32> to vector<1x32xf32>
    %152 = math.tanh %151 : vector<1x32xf32>
    %153 = vector.extract_strided_slice %144 {offsets = [0, 0], sizes = [1, 32], strides = [1, 1]} : vector<1x64xf32> to vector<1x32xf32>
    %154 = vector.extract_strided_slice %144 {offsets = [0, 32], sizes = [1, 32], strides = [1, 1]} : vector<1x64xf32> to vector<1x32xf32>
    %155 = arith.mulf %154, %128 : vector<1x32xf32>
    %156 = arith.mulf %153, %152 : vector<1x32xf32>
    %157 = arith.addf %155, %156 : vector<1x32xf32>
    %158 = math.tanh %157 : vector<1x32xf32>
    %159 = arith.mulf %150, %158 : vector<1x32xf32>
    %c4_i32_45 = arith.constant 4 : i32
    %160 = arith.addi %17, %c4_i32_45 : i32
    %161 = arith.index_cast %160 : i32 to index
    %c0_46 = arith.constant 0 : index
    %162 = vector.load %arg5[%161, %c0_46] : memref<8x128xf32, #tpu.memory_space<vmem>>, vector<1x32xf32>
    tpu.vector_store %arg5[%161, %c0_46], %159 {strides = array<i32>} : memref<8x128xf32, #tpu.memory_space<vmem>>, vector<1x32xf32>,
    %c5_i32 = arith.constant 5 : i32
    %163 = arith.addi %17, %c5_i32 : i32
    %164 = arith.index_cast %163 : i32 to index
    %c0_47 = arith.constant 0 : index
    %165 = vector.load %arg8[%164, %c0_47] : memref<8x128xf32, #tpu.memory_space<vmem>>, vector<1x128xf32>
    %cst_48 = arith.constant dense<0.000000e+00> : vector<1x128xf32>
    %166 = tpu.matmul %159, %4, %cst_48 {dimension_numbers = #tpu.dot_dimension_numbers<[1], [0], [0], [1], [0, 0, 1, 1], [], []>} : vector<1x32xf32>, vector<32x128xf32>, vector<1x128xf32> -> vector<1x128xf32>
    %167 = arith.addf %165, %166 : vector<1x128xf32>
    %168 = vector.extract_strided_slice %167 {offsets = [0, 0], sizes = [1, 64], strides = [1, 1]} : vector<1x128xf32> to vector<1x64xf32>
    %169 = arith.negf %168 : vector<1x64xf32>
    %170 = math.exp %169 : vector<1x64xf32>
    %cst_49 = arith.constant 1.000000e+00 : f32
    %171 = vector.broadcast %cst_49 : f32 to vector<1x64xf32>
    %172 = arith.addf %171, %170 : vector<1x64xf32>
    %173 = arith.divf %171, %172 : vector<1x64xf32>
    %174 = vector.extract_strided_slice %167 {offsets = [0, 96], sizes = [1, 32], strides = [1, 1]} : vector<1x128xf32> to vector<1x32xf32>
    %175 = arith.negf %174 : vector<1x32xf32>
    %176 = math.exp %175 : vector<1x32xf32>
    %cst_50 = arith.constant 1.000000e+00 : f32
    %177 = vector.broadcast %cst_50 : f32 to vector<1x32xf32>
    %178 = arith.addf %177, %176 : vector<1x32xf32>
    %179 = arith.divf %177, %178 : vector<1x32xf32>
    %180 = vector.extract_strided_slice %167 {offsets = [0, 64], sizes = [1, 32], strides = [1, 1]} : vector<1x128xf32> to vector<1x32xf32>
    %181 = math.tanh %180 : vector<1x32xf32>
    %182 = vector.extract_strided_slice %173 {offsets = [0, 0], sizes = [1, 32], strides = [1, 1]} : vector<1x64xf32> to vector<1x32xf32>
    %183 = vector.extract_strided_slice %173 {offsets = [0, 32], sizes = [1, 32], strides = [1, 1]} : vector<1x64xf32> to vector<1x32xf32>
    %184 = arith.mulf %183, %157 : vector<1x32xf32>
    %185 = arith.mulf %182, %181 : vector<1x32xf32>
    %186 = arith.addf %184, %185 : vector<1x32xf32>
    %187 = math.tanh %186 : vector<1x32xf32>
    %188 = arith.mulf %179, %187 : vector<1x32xf32>
    %c5_i32_51 = arith.constant 5 : i32
    %189 = arith.addi %17, %c5_i32_51 : i32
    %190 = arith.index_cast %189 : i32 to index
    %c0_52 = arith.constant 0 : index
    %191 = vector.load %arg5[%190, %c0_52] : memref<8x128xf32, #tpu.memory_space<vmem>>, vector<1x32xf32>
    tpu.vector_store %arg5[%190, %c0_52], %188 {strides = array<i32>} : memref<8x128xf32, #tpu.memory_space<vmem>>, vector<1x32xf32>,
    %c6_i32 = arith.constant 6 : i32
    %192 = arith.addi %17, %c6_i32 : i32
    %193 = arith.index_cast %192 : i32 to index
    %c0_53 = arith.constant 0 : index
    %194 = vector.load %arg8[%193, %c0_53] : memref<8x128xf32, #tpu.memory_space<vmem>>, vector<1x128xf32>
    %cst_54 = arith.constant dense<0.000000e+00> : vector<1x128xf32>
    %195 = tpu.matmul %188, %4, %cst_54 {dimension_numbers = #tpu.dot_dimension_numbers<[1], [0], [0], [1], [0, 0, 1, 1], [], []>} : vector<1x32xf32>, vector<32x128xf32>, vector<1x128xf32> -> vector<1x128xf32>
    %196 = arith.addf %194, %195 : vector<1x128xf32>
    %197 = vector.extract_strided_slice %196 {offsets = [0, 0], sizes = [1, 64], strides = [1, 1]} : vector<1x128xf32> to vector<1x64xf32>
    %198 = arith.negf %197 : vector<1x64xf32>
    %199 = math.exp %198 : vector<1x64xf32>
    %cst_55 = arith.constant 1.000000e+00 : f32
    %200 = vector.broadcast %cst_55 : f32 to vector<1x64xf32>
    %201 = arith.addf %200, %199 : vector<1x64xf32>
    %202 = arith.divf %200, %201 : vector<1x64xf32>
    %203 = vector.extract_strided_slice %196 {offsets = [0, 96], sizes = [1, 32], strides = [1, 1]} : vector<1x128xf32> to vector<1x32xf32>
    %204 = arith.negf %203 : vector<1x32xf32>
    %205 = math.exp %204 : vector<1x32xf32>
    %cst_56 = arith.constant 1.000000e+00 : f32
    %206 = vector.broadcast %cst_56 : f32 to vector<1x32xf32>
    %207 = arith.addf %206, %205 : vector<1x32xf32>
    %208 = arith.divf %206, %207 : vector<1x32xf32>
    %209 = vector.extract_strided_slice %196 {offsets = [0, 64], sizes = [1, 32], strides = [1, 1]} : vector<1x128xf32> to vector<1x32xf32>
    %210 = math.tanh %209 : vector<1x32xf32>
    %211 = vector.extract_strided_slice %202 {offsets = [0, 0], sizes = [1, 32], strides = [1, 1]} : vector<1x64xf32> to vector<1x32xf32>
    %212 = vector.extract_strided_slice %202 {offsets = [0, 32], sizes = [1, 32], strides = [1, 1]} : vector<1x64xf32> to vector<1x32xf32>
    %213 = arith.mulf %212, %186 : vector<1x32xf32>
    %214 = arith.mulf %211, %210 : vector<1x32xf32>
    %215 = arith.addf %213, %214 : vector<1x32xf32>
    %216 = math.tanh %215 : vector<1x32xf32>
    %217 = arith.mulf %208, %216 : vector<1x32xf32>
    %c6_i32_57 = arith.constant 6 : i32
    %218 = arith.addi %17, %c6_i32_57 : i32
    %219 = arith.index_cast %218 : i32 to index
    %c0_58 = arith.constant 0 : index
    %220 = vector.load %arg5[%219, %c0_58] : memref<8x128xf32, #tpu.memory_space<vmem>>, vector<1x32xf32>
    tpu.vector_store %arg5[%219, %c0_58], %217 {strides = array<i32>} : memref<8x128xf32, #tpu.memory_space<vmem>>, vector<1x32xf32>,
    %c7_i32 = arith.constant 7 : i32
    %221 = arith.addi %17, %c7_i32 : i32
    %222 = arith.index_cast %221 : i32 to index
    %c0_59 = arith.constant 0 : index
    %223 = vector.load %arg8[%222, %c0_59] : memref<8x128xf32, #tpu.memory_space<vmem>>, vector<1x128xf32>
    %cst_60 = arith.constant dense<0.000000e+00> : vector<1x128xf32>
    %224 = tpu.matmul %217, %4, %cst_60 {dimension_numbers = #tpu.dot_dimension_numbers<[1], [0], [0], [1], [0, 0, 1, 1], [], []>} : vector<1x32xf32>, vector<32x128xf32>, vector<1x128xf32> -> vector<1x128xf32>
    %225 = arith.addf %223, %224 : vector<1x128xf32>
    %226 = vector.extract_strided_slice %225 {offsets = [0, 0], sizes = [1, 64], strides = [1, 1]} : vector<1x128xf32> to vector<1x64xf32>
    %227 = arith.negf %226 : vector<1x64xf32>
    %228 = math.exp %227 : vector<1x64xf32>
    %cst_61 = arith.constant 1.000000e+00 : f32
    %229 = vector.broadcast %cst_61 : f32 to vector<1x64xf32>
    %230 = arith.addf %229, %228 : vector<1x64xf32>
    %231 = arith.divf %229, %230 : vector<1x64xf32>
    %232 = vector.extract_strided_slice %225 {offsets = [0, 96], sizes = [1, 32], strides = [1, 1]} : vector<1x128xf32> to vector<1x32xf32>
    %233 = arith.negf %232 : vector<1x32xf32>
    %234 = math.exp %233 : vector<1x32xf32>
    %cst_62 = arith.constant 1.000000e+00 : f32
    %235 = vector.broadcast %cst_62 : f32 to vector<1x32xf32>
    %236 = arith.addf %235, %234 : vector<1x32xf32>
    %237 = arith.divf %235, %236 : vector<1x32xf32>
    %238 = vector.extract_strided_slice %225 {offsets = [0, 64], sizes = [1, 32], strides = [1, 1]} : vector<1x128xf32> to vector<1x32xf32>
    %239 = math.tanh %238 : vector<1x32xf32>
    %240 = vector.extract_strided_slice %231 {offsets = [0, 0], sizes = [1, 32], strides = [1, 1]} : vector<1x64xf32> to vector<1x32xf32>
    %241 = vector.extract_strided_slice %231 {offsets = [0, 32], sizes = [1, 32], strides = [1, 1]} : vector<1x64xf32> to vector<1x32xf32>
    %242 = arith.mulf %241, %215 : vector<1x32xf32>
    %243 = arith.mulf %240, %239 : vector<1x32xf32>
    %244 = arith.addf %242, %243 : vector<1x32xf32>
    %245 = math.tanh %244 : vector<1x32xf32>
    %246 = arith.mulf %237, %245 : vector<1x32xf32>
    %c7_i32_63 = arith.constant 7 : i32
    %247 = arith.addi %17, %c7_i32_63 : i32
    %248 = arith.index_cast %247 : i32 to index
    %c0_64 = arith.constant 0 : index
    %249 = vector.load %arg5[%248, %c0_64] : memref<8x128xf32, #tpu.memory_space<vmem>>, vector<1x32xf32>
    tpu.vector_store %arg5[%248, %c0_64], %246 {strides = array<i32>} : memref<8x128xf32, #tpu.memory_space<vmem>>, vector<1x32xf32>,
    %c1_i32_65 = arith.constant 1 : i32
    %250 = vector.shape_cast %246 : vector<1x32xf32> to vector<1x1x32xf32>
    %c0_66 = arith.constant 0 : index
    %c0_67 = arith.constant 0 : index
    %c0_68 = arith.constant 0 : index
    %251 = vector.load %arg6[%c0_66, %c0_67, %c0_68] : memref<1x1x32xf32, #tpu.memory_space<vmem>>, vector<1x1x32xf32>
    tpu.vector_store %arg6[%c0_66, %c0_67, %c0_68], %250 {strides = array<i32>} : memref<1x1x32xf32, #tpu.memory_space<vmem>>, vector<1x1x32xf32>,
    %252 = vector.shape_cast %244 : vector<1x32xf32> to vector<1x1x32xf32>
    %c0_69 = arith.constant 0 : index
    %c0_70 = arith.constant 0 : index
    %c0_71 = arith.constant 0 : index
    %253 = vector.load %arg7[%c0_69, %c0_70, %c0_71] : memref<1x1x32xf32, #tpu.memory_space<vmem>>, vector<1x1x32xf32>
    tpu.vector_store %arg7[%c0_69, %c0_70, %c0_71], %252 {strides = array<i32>} : memref<1x1x32xf32, #tpu.memory_space<vmem>>, vector<1x1x32xf32>,
    return
  }
  func.func @transform_1(%arg0: i32) -> (i32, i32, i32) {
    %c0_i32 = arith.constant 0 : i32
    %c0_i32_0 = arith.constant 0 : i32
    %c0_i32_1 = arith.constant 0 : i32
    return %arg0, %c0_i32, %c0_i32_0 : i32, i32, i32
  }
  func.func @transform_2(%arg0: i32) -> (i32, i32, i32) {
    %c0_i32 = arith.constant 0 : i32
    %c0_i32_0 = arith.constant 0 : i32
    %c0_i32_1 = arith.constant 0 : i32
    return %arg0, %c0_i32, %c0_i32_0 : i32, i32, i32
  }
  func.func @transform_3(%arg0: i32) -> (i32, i32, i32) {
    %c0_i32 = arith.constant 0 : i32
    %c0_i32_0 = arith.constant 0 : i32
    %c0_i32_1 = arith.constant 0 : i32
    return %arg0, %c0_i32, %c0_i32_0 : i32, i32, i32
  }
  func.func @transform_4(%arg0: i32) -> (i32, i32) {
    %c0_i32 = arith.constant 0 : i32
    %c0_i32_0 = arith.constant 0 : i32
    %c0_i32_1 = arith.constant 0 : i32
    return %c0_i32, %c0_i32_0 : i32, i32
  }
  func.func @transform_5(%arg0: i32) -> (i32, i32, i32) {
    %c0_i32 = arith.constant 0 : i32
    %c0_i32_0 = arith.constant 0 : i32
    %c0_i32_1 = arith.constant 0 : i32
    return %arg0, %c0_i32, %c0_i32_0 : i32, i32, i32
  }
  func.func @transform_6(%arg0: i32) -> (i32, i32, i32) {
    %c0_i32 = arith.constant 0 : i32
    %c0_i32_0 = arith.constant 0 : i32
    %c0_i32_1 = arith.constant 0 : i32
    return %arg0, %c0_i32, %c0_i32_0 : i32, i32, i32
  }
}

</mosaic_0001>

<llo_original>
// kernel: tpu_custom_call.1
$region0: #{tpu_custom_call.1}
  #allocation0 [shape = 'u32[]', space=smem, size = 0x4, offset = 0x4, fixed_abs, tag = 'smem constant byte address 0x4 - core index']
  #allocation1 [shape = 'u32[144,128]{1,0:T(1,128)}', space=vmem, size = 0x12000, scoped, tag = 'internal scratch']
  #allocation2 [shape = 'f32[8,128]{1,0:T(8,128)}', space=vmem, size = 0x1000, scoped, tag = 'scratch operand']
  #allocation13 [shape = 's32[]', space=sflag, size = 0x4, offset = 0, fixed_abs, tag = 'sflag constant byte address 0x0 - dummy sync flag']
  #allocation14 [shape = 's32[]', space=sflag, size = 0x4, offset = 0, fixed_abs, tag = 'sflag constant byte address 0x0 - dummy sync flag']
  #allocation15 [shape = 'u32[]', space=smem, size = 0x4, offset = 0x44, fixed_abs, tag = 'smem constant byte address 0x44 - assertion arg 0']
  #allocation16 [shape = 'u32[]', space=smem, size = 0x4, offset = 0x48, fixed_abs, tag = 'smem constant byte address 0x48 - assertion arg 1']
  %s0 = inlined_call_operand.hbm [shape: f32[8,128], index: 0, kind: input, shape index: {}]
  %s1 = inlined_call_operand.hbm [shape: f32[2,128,128], index: 1, kind: input, shape index: {}]
  %s2 = inlined_call_operand.hbm [shape: f32[2,32,128], index: 2, kind: input, shape index: {}]
  %s3 = inlined_call_operand.vmem [shape: f32[2,1,128], index: 3, kind: input, shape index: {}]
  %s4 = inlined_call_operand.hbm [shape: f32[8,128], index: 4, kind: output, shape index: {0}]
  %s5 = inlined_call_operand.hbm [shape: f32[2,1,32], index: 5, kind: output, shape index: {1}]
  %s6 = inlined_call_operand.hbm [shape: f32[2,1,32], index: 6, kind: output, shape index: {2}]
  %7 = xla_tuple %s4, %s5, %s6
  %s8 = sld [smem:[#allocation0]]
  $region78: #{tpu_custom_call.1} parent=0
    _
  %s10 = ssub.s32 1, %s8
  %s11 = scalar_select 0, %s10, %s8
  $region1: #{tpu_custom_call.1} parent=0
    #allocation3 [shape = 'u8[131072]{0}', space=vmem, size = 0x20000, scoped, tag = 'input window, operand 1']
    #allocation4 [shape = 's32[2]{0}', space=sflag, size = 0x8, scoped, tag = 'scoped memory for tpu_custom_call.1']
    #allocation5 [shape = 's32[2]{0}', space=sflag, size = 0x8, scoped, tag = 'scoped memory for tpu_custom_call.1']
    #allocation6 [shape = 'u8[32768]{0}', space=vmem, size = 0x8000, scoped, tag = 'input window, operand 2']
    #allocation7 [shape = 's32[2]{0}', space=sflag, size = 0x8, scoped, tag = 'scoped memory for tpu_custom_call.1']
    #allocation8 [shape = 'u8[4096]{0}', space=vmem, size = 0x1000, scoped, tag = 'output window, operand 0, single buffered']
    #allocation9 [shape = 'u8[1024]{0}', space=vmem, size = 0x400, scoped, tag = 'output window, operand 1']
    #allocation10 [shape = 's32[2]{0}', space=sflag, size = 0x8, scoped, tag = 'scoped memory for tpu_custom_call.1']
    #allocation11 [shape = 'u8[1024]{0}', space=vmem, size = 0x400, scoped, tag = 'output window, operand 2']
    %12 = vsyncpa [#allocation4], 0
    %s13 = scalar_lea.sflag [#allocation4], 1
    %14 = vsyncpa %s13, 0
    %15 = vsyncpa [#allocation7], 0
    %s16 = scalar_lea.sflag [#allocation7], 1
    %17 = vsyncpa %s16, 0
    %18 = vsyncpa [#allocation5], 0
    %19 = vsyncpa [#allocation10], 0
    %s20 = scalar_lea.sflag [#allocation10], 1
    %21 = vsyncpa %s20, 0
    loop: start=0, step=1, limit=4
    $region2: #{tpu_custom_call.1} parent=1 // loop_pre_header
      _
    $region3: #{tpu_custom_call.1} parent=1 // loop_header
      %s23 = sphi 0, %s27
      %p24 = scmp.ge.s32.totalorder %s23, 4
      %s33 = sphi 0, %s35
      %s36 = sphi 0, %s33
      %s37 = sphi 0, %s36
      %s53 = sphi 0, %s37
      %s59 = sphi 0, %s61
      %s62 = sphi 0, %s59
      %s63 = sphi 0, %s62
      %s79 = sphi 0, %s63
      %s85 = sphi 0, %s87
      %s88 = sphi 0, %s85
      %s89 = sphi 0, %s88
      %s105 = sphi 0, %s89
      %s109 = sphi 0, %s109
      %s111 = sphi 0, %s109
      %s112 = sphi 0, %s111
      %s126 = sphi 0, %s112
      %s132 = sphi 0, %s134
      %s135 = sphi 0, %s132
      %s136 = sphi 0, %s135
      %s152 = sphi 0, %s136
      %s158 = sphi 0, %s160
      %s161 = sphi 0, %s158
      %s162 = sphi 0, %s161
      %s178 = sphi 0, %s162
    $region4: #{tpu_custom_call.1} parent=1 // loop_header_branch
      %26 = sbr.rel (%p24) target = $region8
    $region5: #{tpu_custom_call.1} parent=1 // loop_body
      %s28 = ssub.s32 %s23, 1
      %s29 = ssub.s32 %s23, 2
      %s30 = sadd.s32 %s23, 1
      %s31 = ssub.s32 %s23, %s30
      %p32 = scmp.eq.s32.totalorder %s31, 0
      %s34 = sadd.s32 %s33, 1
      %s35 = scalar_select %p32, %s33, %s34
      %p38 = pneg %p32
      %p39 = scmp.eq.s32.totalorder %s23, 1
      %p40 = por %p38, %p39
      %p41 = scmp.ne.s32.totalorder %s33, %s36
      %p42 = scmp.eq.s32.totalorder %s23, 0
      %p43 = por %p41, %p42
      %p44 = scmp.ne.s32.totalorder %s33, %s36
      %p45 = scmp.eq.s32.totalorder %s28, 1
      %p46 = por %p44, %p45
      %p47 = scmp.ne.s32.totalorder %s36, %s37
      %p48 = scmp.eq.s32.totalorder %s28, 0
      %p49 = por %p47, %p48
      %p50 = scmp.ne.s32.totalorder %s36, %s37
      %p51 = scmp.eq.s32.totalorder %s29, 1
      %p52 = por %p50, %p51
      %p54 = scmp.ne.s32.totalorder %s37, %s53
      %p55 = scmp.eq.s32.totalorder %s29, 0
      %p56 = por %p54, %p55
      %s57 = ssub.s32 %s23, %s30
      %p58 = scmp.eq.s32.totalorder %s57, 0
      %s60 = sadd.s32 %s59, 1
      %s61 = scalar_select %p58, %s59, %s60
      %p64 = pneg %p58
      %p65 = scmp.eq.s32.totalorder %s23, 1
      %p66 = por %p64, %p65
      %p67 = scmp.ne.s32.totalorder %s59, %s62
      %p68 = scmp.eq.s32.totalorder %s23, 0
      %p69 = por %p67, %p68
      %p70 = scmp.ne.s32.totalorder %s59, %s62
      %p71 = scmp.eq.s32.totalorder %s28, 1
      %p72 = por %p70, %p71
      %p73 = scmp.ne.s32.totalorder %s62, %s63
      %p74 = scmp.eq.s32.totalorder %s28, 0
      %p75 = por %p73, %p74
      %p76 = scmp.ne.s32.totalorder %s62, %s63
      %p77 = scmp.eq.s32.totalorder %s29, 1
      %p78 = por %p76, %p77
      %p80 = scmp.ne.s32.totalorder %s63, %s79
      %p81 = scmp.eq.s32.totalorder %s29, 0
      %p82 = por %p80, %p81
      %s83 = ssub.s32 %s23, %s30
      %p84 = scmp.eq.s32.totalorder %s83, 0
      %s86 = sadd.s32 %s85, 1
      %s87 = scalar_select %p84, %s85, %s86
      %p90 = pneg %p84
      %p91 = scmp.eq.s32.totalorder %s23, 1
      %p92 = por %p90, %p91
      %p93 = scmp.ne.s32.totalorder %s85, %s88
      %p94 = scmp.eq.s32.totalorder %s23, 0
      %p95 = por %p93, %p94
      %p96 = scmp.ne.s32.totalorder %s85, %s88
      %p97 = scmp.eq.s32.totalorder %s28, 1
      %p98 = por %p96, %p97
      %p99 = scmp.ne.s32.totalorder %s88, %s89
      %p100 = scmp.eq.s32.totalorder %s28, 0
      %p101 = por %p99, %p100
      %p102 = scmp.ne.s32.totalorder %s88, %s89
      %p103 = scmp.eq.s32.totalorder %s29, 1
      %p104 = por %p102, %p103
      %p106 = scmp.ne.s32.totalorder %s89, %s105
      %p107 = scmp.eq.s32.totalorder %s29, 0
      %p108 = por %p106, %p107
      %s110 = sadd.s32 %s109, 1
      %p113 = scmp.eq.s32.totalorder %s23, 1
      %p114 = scmp.ne.s32.totalorder %s109, %s111
      %p115 = scmp.eq.s32.totalorder %s23, 0
      %p116 = por %p114, %p115
      %p117 = scmp.ne.s32.totalorder %s109, %s111
      %p118 = scmp.eq.s32.totalorder %s28, 1
      %p119 = por %p117, %p118
      %p120 = scmp.ne.s32.totalorder %s111, %s112
      %p121 = scmp.eq.s32.totalorder %s28, 0
      %p122 = por %p120, %p121
      %p123 = scmp.ne.s32.totalorder %s111, %s112
      %p124 = scmp.eq.s32.totalorder %s29, 1
      %p125 = por %p123, %p124
      %p127 = scmp.ne.s32.totalorder %s112, %s126
      %p128 = scmp.eq.s32.totalorder %s29, 0
      %p129 = por %p127, %p128
      %s130 = ssub.s32 %s23, %s30
      %p131 = scmp.eq.s32.totalorder %s130, 0
      %s133 = sadd.s32 %s132, 1
      %s134 = scalar_select %p131, %s132, %s133
      %p137 = pneg %p131
      %p138 = scmp.eq.s32.totalorder %s23, 1
      %p139 = por %p137, %p138
      %p140 = scmp.ne.s32.totalorder %s132, %s135
      %p141 = scmp.eq.s32.totalorder %s23, 0
      %p142 = por %p140, %p141
      %p143 = scmp.ne.s32.totalorder %s132, %s135
      %p144 = scmp.eq.s32.totalorder %s28, 1
      %p145 = por %p143, %p144
      %p146 = scmp.ne.s32.totalorder %s135, %s136
      %p147 = scmp.eq.s32.totalorder %s28, 0
      %p148 = por %p146, %p147
      %p149 = scmp.ne.s32.totalorder %s135, %s136
      %p150 = scmp.eq.s32.totalorder %s29, 1
      %p151 = por %p149, %p150
      %p153 = scmp.ne.s32.totalorder %s136, %s152
      %p154 = scmp.eq.s32.totalorder %s29, 0
      %p155 = por %p153, %p154
      %s156 = ssub.s32 %s23, %s30
      %p157 = scmp.eq.s32.totalorder %s156, 0
      %s159 = sadd.s32 %s158, 1
      %s160 = scalar_select %p157, %s158, %s159
      %p163 = pneg %p157
      %p164 = scmp.eq.s32.totalorder %s23, 1
      %p165 = por %p163, %p164
      %p166 = scmp.ne.s32.totalorder %s158, %s161
      %p167 = scmp.eq.s32.totalorder %s23, 0
      %p168 = por %p166, %p167
      %p169 = scmp.ne.s32.totalorder %s158, %s161
      %p170 = scmp.eq.s32.totalorder %s28, 1
      %p171 = por %p169, %p170
      %p172 = scmp.ne.s32.totalorder %s161, %s162
      %p173 = scmp.eq.s32.totalorder %s28, 0
      %p174 = por %p172, %p173
      %p175 = scmp.ne.s32.totalorder %s161, %s162
      %p176 = scmp.eq.s32.totalorder %s29, 1
      %p177 = por %p175, %p176
      %p179 = scmp.ne.s32.totalorder %s162, %s178
      %p180 = scmp.eq.s32.totalorder %s29, 0
      %p181 = por %p179, %p180
      %p182 = scmp.le.s32.totalorder 1, %s23
      %p183 = scmp.lt.s32.totalorder %s23, 3
      %p184 = pnand %p182, %p183
      %p185 = pneg %p184
      // Predicated region
      $region9: #{tpu_custom_call.1} parent=5 // pred_check
        _
      $region10: #{tpu_custom_call.1} parent=5 // pred_check_branch
        %187 = sbr.rel (%p184) target = $region12
      $region11: #{tpu_custom_call.1} parent=5 // pred_region
        %s188 = ssub.s32 %s23, 1
      $region12: #{tpu_custom_call.1} parent=5 // pred_fallthru
        _
      %p189 = scmp.lt.s32.totalorder %s23, 2
      // Predicated region
      $region13: #{tpu_custom_call.1} parent=5 // pred_check
        %p190 = pneg %p189
      $region14: #{tpu_custom_call.1} parent=5 // pred_check_branch
        %192 = sbr.rel (%p190) target = $region16
      $region15: #{tpu_custom_call.1} parent=5 // pred_region
        // Predicated region
        $region17: #{tpu_custom_call.1} parent=15 // pred_check
          %p193 = pneg %p43
        $region18: #{tpu_custom_call.1} parent=15 // pred_check_branch
          %195 = sbr.rel (%p193) target = $region20
        $region19: #{tpu_custom_call.1} parent=15 // pred_region
          %s196 = sand.u32 %s33, 1
          %s197 = scalar_lea.sflag [#allocation4], %s196
          %s198 = sand.u32 %s33, 1
          %s199 = smul.addr %s198, 128
          %s200 = scalar_lea.vmem [#allocation3], %s199
          %s202 = ssub.s32 2048, 2048
          %203 = vsyncadd %s197, %s202
          %s204 = smul.addr %s23, 16
          %s205 = smul.addr %s204, 128
          %s206 = scalar_lea.hbm %s1, %s205
          %s207 = sshll.u32 %s200, 4
          %s208 = int_to_ptr.vmem [resolvable:$true] %s207
          %213 = dma.hbm_to_vmem [thread:$0]  %s206, 2048, %s208, %s197, 128, 128, 8
        $region20: #{tpu_custom_call.1} parent=15 // pred_fallthru
          _
        // Predicated region
        $region21: #{tpu_custom_call.1} parent=15 // pred_check
          %p214 = pneg %p69
        $region22: #{tpu_custom_call.1} parent=15 // pred_check_branch
          %216 = sbr.rel (%p214) target = $region24
        $region23: #{tpu_custom_call.1} parent=15 // pred_region
          %s217 = sand.u32 %s59, 1
          %s218 = scalar_lea.sflag [#allocation7], %s217
          %s219 = sand.u32 %s59, 1
          %s220 = smul.addr %s219, 32
          %s221 = scalar_lea.vmem [#allocation6], %s220
          %s223 = ssub.s32 512, 512
          %224 = vsyncadd %s218, %s223
          %s225 = smul.addr %s23, 4
          %s226 = smul.addr %s225, 128
          %s227 = scalar_lea.hbm %s2, %s226
          %s228 = sshll.u32 %s221, 4
          %s229 = int_to_ptr.vmem [resolvable:$true] %s228
          %234 = dma.hbm_to_vmem [thread:$0]  %s227, 512, %s229, %s218, 128, 128, 8
        $region24: #{tpu_custom_call.1} parent=15 // pred_fallthru
          _
        // Predicated region
        $region25: #{tpu_custom_call.1} parent=15 // pred_check
          %p235 = pneg %p95
        $region26: #{tpu_custom_call.1} parent=15 // pred_check_branch
          %237 = sbr.rel (%p235) target = $region28
        $region27: #{tpu_custom_call.1} parent=15 // pred_region
          %p238 = scmp.lt.s32.totalorder %s23, 1
          %s239 = scalar_select %p238, %s23, 1
          %s240 = scalar_lea.vmem %s3, %s239
        $region28: #{tpu_custom_call.1} parent=15 // pred_fallthru
          _
      $region16: #{tpu_custom_call.1} parent=5 // pred_fallthru
        _
      %p241 = scmp.le.s32.totalorder 1, %s23
      %p242 = scmp.lt.s32.totalorder %s23, 3
      %p243 = pnand %p241, %p242
      %p244 = pneg %p243
      // Predicated region
      $region29: #{tpu_custom_call.1} parent=5 // pred_check
        _
      $region30: #{tpu_custom_call.1} parent=5 // pred_check_branch
        %246 = sbr.rel (%p243) target = $region32
      $region31: #{tpu_custom_call.1} parent=5 // pred_region
        %s247 = ssub.s32 %s23, 1
        %s248 = sand.u32 %s36, 1
        %s249 = scalar_lea.sflag [#allocation4], %s248
        %s250 = sand.u32 %s36, 1
        %s251 = smul.addr %s250, 128
        %s252 = scalar_lea.vmem [#allocation3], %s251
        // Predicated region
        $region33: #{tpu_custom_call.1} parent=31 // pred_check
          %p253 = pneg %p49
        $region34: #{tpu_custom_call.1} parent=31 // pred_check_branch
          %255 = sbr.rel (%p253) target = $region36
        $region35: #{tpu_custom_call.1} parent=31 // pred_region
          %256 = dma.done %s249, 2048
        $region36: #{tpu_custom_call.1} parent=31 // pred_fallthru
          _
        %s257 = sand.u32 %s62, 1
        %s258 = scalar_lea.sflag [#allocation7], %s257
        %s259 = sand.u32 %s62, 1
        %s260 = smul.addr %s259, 32
        %s261 = scalar_lea.vmem [#allocation6], %s260
        // Predicated region
        $region37: #{tpu_custom_call.1} parent=31 // pred_check
          %p262 = pneg %p75
        $region38: #{tpu_custom_call.1} parent=31 // pred_check_branch
          %264 = sbr.rel (%p262) target = $region40
        $region39: #{tpu_custom_call.1} parent=31 // pred_region
          %265 = dma.done %s258, 512
        $region40: #{tpu_custom_call.1} parent=31 // pred_fallthru
          _
        %s266 = sand.u32 %s36, 1
        %s267 = scalar_lea.sflag [#allocation4], %s266
        %s268 = sand.u32 %s36, 1
        %s269 = smul.addr %s268, 128
        %s270 = scalar_lea.vmem [#allocation3], %s269
        %p271 = pneg %p49
        %p272 = pneg %p46
        %s273 = sand.u32 %s62, 1
        %s274 = scalar_lea.sflag [#allocation7], %s273
        %s275 = sand.u32 %s62, 1
        %s276 = smul.addr %s275, 32
        %s277 = scalar_lea.vmem [#allocation6], %s276
        %p278 = pneg %p75
        %p279 = pneg %p72
        %p280 = scmp.lt.s32.totalorder %s28, 1
        %s281 = scalar_select %p280, %s28, 1
        %s282 = scalar_lea.vmem %s3, %s281
        %p283 = pneg %p101
        %p284 = pneg %p98
        %p285 = pneg %p122
        %p286 = pneg %p119
        %p287 = pneg %p148
        %p288 = pneg %p145
        %s289 = sand.u32 %s28, 1
        %s290 = scalar_lea.sflag [#allocation10], %s289
        %s291 = sand.u32 %s135, 1
        %s292 = scalar_lea.vmem [#allocation9], %s291
        %p293 = pneg %p174
        %p294 = pneg %p171
        %s295 = sand.u32 %s28, 1
        %s296 = scalar_lea.sflag [#allocation10], %s295
        %s297 = sand.u32 %s161, 1
        %s298 = scalar_lea.vmem [#allocation11], %s297
        %p299 = scmp.lt.s32.totalorder %s28, 1
        %s300 = scalar_select %p299, %s28, 1
        %s301 = scalar_lea.vmem %s3, %s300
        %p302 = scmp.eq.s32.totalorder %s28, 0
        // Predicated region
        $region41: #{tpu_custom_call.1} parent=31 // pred_check
          %p303 = pneg %p302
        $region42: #{tpu_custom_call.1} parent=31 // pred_check_branch
          %305 = sbr.rel (%p303) target = $region44
        $region43: #{tpu_custom_call.1} parent=31 // pred_region
          $region45: #{tpu_custom_call.1} parent=43
            #allocation12 [shape = 's32[1]{0}', space=sflag, size = 0x4, scoped, tag = 'scoped memory for tpu_custom_call.1']
            // Predicated region
            $region46: #{tpu_custom_call.1} parent=45 // pred_check
              _
            $region47: #{tpu_custom_call.1} parent=45 // pred_check_branch
              %307 = sbr.rel target = $region49
            $region48: #{tpu_custom_call.1} parent=45 // pred_region
              %308 = sst [smem:[#allocation15]] [#allocation14]
              %309 = sst [smem:[#allocation16]] [#allocation13]
            $region49: #{tpu_custom_call.1} parent=45 // pred_fallthru
              _
            %311 = shalt.err (0)
            %s313 = sshll.u32 [#allocation8], 4
            %s314 = int_to_ptr.vmem [resolvable:$true] %s313
            %316 = dma.hbm_to_vmem [thread:$0]  %s0, 128, %s314, [#allocation12]
            %s317 = smul.u32 8, 1
            %s318 = sshll.u32 %s317, 4
            %319 = dma.done [#allocation12], %s318
        $region44: #{tpu_custom_call.1} parent=31 // pred_fallthru
          _
        %v320 = vld [vmem:[%s261] sm:$0xff]
        %v321 = vld [vmem:[%s261 + $0x8] sm:$0xff]
        %v322 = vld [vmem:[%s261 + $0x10] sm:$0xff]
        %v323 = vld [vmem:[%s261 + $0x18] sm:$0xff]
        %v324 = vld [vmem:[#allocation8] sm:$0xff]
        %v325 = vld [vmem:[%s252] sm:$0xff]
        %v326 = vld [vmem:[%s252 + $0x8] sm:$0xff]
        %v327 = vld [vmem:[%s252 + $0x10] sm:$0xff]
        %v328 = vld [vmem:[%s252 + $0x18] sm:$0xff]
        %v329 = vld [vmem:[%s252 + $0x20] sm:$0xff]
        %v330 = vld [vmem:[%s252 + $0x28] sm:$0xff]
        %v331 = vld [vmem:[%s252 + $0x30] sm:$0xff]
        %v332 = vld [vmem:[%s252 + $0x38] sm:$0xff]
        %v333 = vld [vmem:[%s252 + $0x40] sm:$0xff]
        %v334 = vld [vmem:[%s252 + $0x48] sm:$0xff]
        %v335 = vld [vmem:[%s252 + $0x50] sm:$0xff]
        %v336 = vld [vmem:[%s252 + $0x58] sm:$0xff]
        %v337 = vld [vmem:[%s252 + $0x60] sm:$0xff]
        %v338 = vld [vmem:[%s252 + $0x68] sm:$0xff]
        %v339 = vld [vmem:[%s252 + $0x70] sm:$0xff]
        %v340 = vld [vmem:[%s252 + $0x78] sm:$0xff]
        %v341 = vld [vmem:[%s301] sm:$0x1]
        %v343 = vlaneseq
        %v344 = vshrl.u32 %v343, 7
        %v345 = vsub.s32 0, %v344
        %v346 = vrot.slane %v341, %v345
        %348 = vmatprep.subr.mxu0 0.0
        %349 = vmatpush1.msra.mxu0 %v325
        %350 = vmatprep.subr.mxu0 0.0
        %351 = vmatpush1.msra.mxu0 %v326
        %352 = vmatprep.subr.mxu0 0.0
        %353 = vmatpush1.msra.mxu0 %v327
        %354 = vmatprep.subr.mxu0 0.0
        %355 = vmatpush1.msra.mxu0 %v328
        %356 = vmatprep.subr.mxu0 0.0
        %357 = vmatpush1.msra.mxu0 %v329
        %358 = vmatprep.subr.mxu0 0.0
        %359 = vmatpush1.msra.mxu0 %v330
        %360 = vmatprep.subr.mxu0 0.0
        %361 = vmatpush1.msra.mxu0 %v331
        %362 = vmatprep.subr.mxu0 0.0
        %363 = vmatpush1.msra.mxu0 %v332
        %364 = vmatprep.subr.mxu0 0.0
        %365 = vmatpush1.msra.mxu0 %v333
        %366 = vmatprep.subr.mxu0 0.0
        %367 = vmatpush1.msra.mxu0 %v334
        %368 = vmatprep.subr.mxu0 0.0
        %369 = vmatpush1.msra.mxu0 %v335
        %370 = vmatprep.subr.mxu0 0.0
        %371 = vmatpush1.msra.mxu0 %v336
        %372 = vmatprep.subr.mxu0 0.0
        %373 = vmatpush1.msra.mxu0 %v337
        %374 = vmatprep.subr.mxu0 0.0
        %375 = vmatpush1.msra.mxu0 %v338
        %376 = vmatprep.subr.mxu0 0.0
        %377 = vmatpush1.msra.mxu0 %v339
        %378 = vmatprep.subr.mxu0 0.0
        %379 = vmatpush1.msra.mxu0 %v340
        %380 = vmatprep.subr.mxu0 0.0
        %381 = vmatpush1.msra.mxu0 0.0
        %382 = vmatprep.subr.mxu0 0.0
        %383 = vmatpush1.msra.mxu0 0.0
        %384 = vmatprep.subr.mxu0 0.0
        %385 = vmatpush1.msra.mxu0 0.0
        %386 = vmatprep.subr.mxu0 0.0
        %387 = vmatpush1.msra.mxu0 0.0
        %388 = vmatprep.subr.mxu0 0.0
        %389 = vmatpush1.msra.mxu0 0.0
        %390 = vmatprep.subr.mxu0 0.0
        %391 = vmatpush1.msra.mxu0 0.0
        %392 = vmatprep.subr.mxu0 0.0
        %393 = vmatpush1.msra.mxu0 0.0
        %394 = vmatprep.subr.mxu0 0.0
        %395 = vmatpush1.msra.mxu0 0.0
        %396 = vmatprep.subr.mxu0 0.0
        %397 = vmatpush1.msra.mxu0 0.0
        %398 = vmatprep.subr.mxu0 0.0
        %399 = vmatpush1.msra.mxu0 0.0
        %400 = vmatprep.subr.mxu0 0.0
        %401 = vmatpush1.msra.mxu0 0.0
        %402 = vmatprep.subr.mxu0 0.0
        %403 = vmatpush1.msra.mxu0 0.0
        %404 = vmatprep.subr.mxu0 0.0
        %405 = vmatpush1.msra.mxu0 0.0
        %406 = vmatprep.subr.mxu0 0.0
        %407 = vmatpush1.msra.mxu0 0.0
        %408 = vmatprep.subr.mxu0 0.0
        %409 = vmatpush1.msra.mxu0 0.0
        %410 = vmatprep.subr.mxu0 0.0
        %411 = vmatpush1.msra.mxu0 0.0
        %412 = vmatprep.mubr.f32.mxu0 0.0
        %413 = vmatmul.mubr.f32.gmra.mrb[0].mxu0 %v324
        %v414 = vpop.f32.mrb[0].mxu0
        %v415 = vadd.f32 %v346, %v414
        %v416 = vpop.f32.mrb[0].mxu0
        %417 = vdwg.mxu0
        %418 = vst [vmem:[#allocation2] sm:$0xff] %v415
        %v419 = vld [vmem:[#allocation2] sm:$0x1]
        %vm420 = vcmask 261120
        %v422 = vsel %vm420, 0.0, 0
        %424 = vmatprep.subr.mxu0 0.0
        %425 = vmatpush1.msra.mxu0 %v320
        %426 = vmatprep.subr.mxu0 0.0
        %427 = vmatpush1.msra.mxu0 %v321
        %428 = vmatprep.subr.mxu0 0.0
        %429 = vmatpush1.msra.mxu0 %v322
        %430 = vmatprep.subr.mxu0 0.0
        %431 = vmatpush1.msra.mxu0 %v323
        %432 = vmatprep.subr.mxu0 0.0
        %433 = vmatpush1.msra.mxu0 0.0
        %434 = vmatprep.subr.mxu0 0.0
        %435 = vmatpush1.msra.mxu0 0.0
        %436 = vmatprep.subr.mxu0 0.0
        %437 = vmatpush1.msra.mxu0 0.0
        %438 = vmatprep.subr.mxu0 0.0
        %439 = vmatpush1.msra.mxu0 0.0
        %440 = vmatprep.subr.mxu0 0.0
        %441 = vmatpush1.msra.mxu0 0.0
        %442 = vmatprep.subr.mxu0 0.0
        %443 = vmatpush1.msra.mxu0 0.0
        %444 = vmatprep.subr.mxu0 0.0
        %445 = vmatpush1.msra.mxu0 0.0
        %446 = vmatprep.subr.mxu0 0.0
        %447 = vmatpush1.msra.mxu0 0.0
        %448 = vmatprep.subr.mxu0 0.0
        %449 = vmatpush1.msra.mxu0 0.0
        %450 = vmatprep.subr.mxu0 0.0
        %451 = vmatpush1.msra.mxu0 0.0
        %452 = vmatprep.subr.mxu0 0.0
        %453 = vmatpush1.msra.mxu0 0.0
        %454 = vmatprep.subr.mxu0 0.0
        %455 = vmatpush1.msra.mxu0 0.0
        %456 = vmatprep.subr.mxu0 0.0
        %457 = vmatpush1.msra.mxu0 0.0
        %458 = vmatprep.subr.mxu0 0.0
        %459 = vmatpush1.msra.mxu0 0.0
        %460 = vmatprep.subr.mxu0 0.0
        %461 = vmatpush1.msra.mxu0 0.0
        %462 = vmatprep.subr.mxu0 0.0
        %463 = vmatpush1.msra.mxu0 0.0
        %464 = vmatprep.subr.mxu0 0.0
        %465 = vmatpush1.msra.mxu0 0.0
        %466 = vmatprep.subr.mxu0 0.0
        %467 = vmatpush1.msra.mxu0 0.0
        %468 = vmatprep.subr.mxu0 0.0
        %469 = vmatpush1.msra.mxu0 0.0
        %470 = vmatprep.subr.mxu0 0.0
        %471 = vmatpush1.msra.mxu0 0.0
        %472 = vmatprep.subr.mxu0 0.0
        %473 = vmatpush1.msra.mxu0 0.0
        %474 = vmatprep.subr.mxu0 0.0
        %475 = vmatpush1.msra.mxu0 0.0
        %476 = vmatprep.subr.mxu0 0.0
        %477 = vmatpush1.msra.mxu0 0.0
        %478 = vmatprep.subr.mxu0 0.0
        %479 = vmatpush1.msra.mxu0 0.0
        %480 = vmatprep.subr.mxu0 0.0
        %481 = vmatpush1.msra.mxu0 0.0
        %482 = vmatprep.subr.mxu0 0.0
        %483 = vmatpush1.msra.mxu0 0.0
        %484 = vmatprep.subr.mxu0 0.0
        %485 = vmatpush1.msra.mxu0 0.0
        %486 = vmatprep.subr.mxu0 0.0
        %487 = vmatpush1.msra.mxu0 0.0
        %488 = vmatprep.mubr.f32.mxu0 0.0
        %489 = vmatmul.mubr.f32.gmra.mrb[0].mxu0 %v422
        %v490 = vpop.f32.mrb[0].mxu0
        %v491 = vadd.f32 0.0, %v490
        %v492 = vpop.f32.mrb[0].mxu0
        %493 = vdwg.mxu0
        %v494 = vadd.f32 %v419, %v491
        %v495 = vxor.u32 %v494, 2147483648
        %v496 = vmul.f32 %v495, 1.442695
        %v497 = vpow.pop %v496
        %v498 = vadd.f32 %v497, 1.0
        %v499 = vrcp.pop %v498
        %v500 = vmul.f32 1.0, %v499
        %v501 = vtanh.pop %v494
        %v502 = vmul.f32 %v500, 0.0
        %504 = vrot.lane.b32.xlu0 %v501, 64
        %v505 = vpop.permute.xlu0 %504
        %v507 = vmul.f32 %v500, %v505
        %509 = vrot.lane.b32.xlu0 %v507, 32
        %v510 = vpop.permute.xlu0 %509
        %v512 = vadd.f32 %v502, %v510
        %v513 = vtanh.pop %v512
        %515 = vrot.lane.b32.xlu0 %v513, 64
        %v516 = vpop.permute.xlu0 %515
        %v518 = vmul.f32 %v500, %v516
        %520 = vrot.lane.b32.xlu0 %v518, 32
        %v521 = vpop.permute.xlu0 %520
        %vm523 = vcmask 253952
        %524 = vst.msk [vmem:[#allocation8] sm:$0x1] %vm523, %v521
        %s525 = sadd.s32 0, 1
        %s526 = scalar_lea.vmem [#allocation2], %s525
        %v527 = vld [vmem:[%s526] sm:$0x1]
        %v528 = vsel %vm420, %v521, 0
        %530 = vmatprep.subr.mxu0 0.0
        %531 = vmatpush1.msra.mxu0 %v320
        %532 = vmatprep.subr.mxu0 0.0
        %533 = vmatpush1.msra.mxu0 %v321
        %534 = vmatprep.subr.mxu0 0.0
        %535 = vmatpush1.msra.mxu0 %v322
        %536 = vmatprep.subr.mxu0 0.0
        %537 = vmatpush1.msra.mxu0 %v323
        %538 = vmatprep.subr.mxu0 0.0
        %539 = vmatpush1.msra.mxu0 0.0
        %540 = vmatprep.subr.mxu0 0.0
        %541 = vmatpush1.msra.mxu0 0.0
        %542 = vmatprep.subr.mxu0 0.0
        %543 = vmatpush1.msra.mxu0 0.0
        %544 = vmatprep.subr.mxu0 0.0
        %545 = vmatpush1.msra.mxu0 0.0
        %546 = vmatprep.subr.mxu0 0.0
        %547 = vmatpush1.msra.mxu0 0.0
        %548 = vmatprep.subr.mxu0 0.0
        %549 = vmatpush1.msra.mxu0 0.0
        %550 = vmatprep.subr.mxu0 0.0
        %551 = vmatpush1.msra.mxu0 0.0
        %552 = vmatprep.subr.mxu0 0.0
        %553 = vmatpush1.msra.mxu0 0.0
        %554 = vmatprep.subr.mxu0 0.0
        %555 = vmatpush1.msra.mxu0 0.0
        %556 = vmatprep.subr.mxu0 0.0
        %557 = vmatpush1.msra.mxu0 0.0
        %558 = vmatprep.subr.mxu0 0.0
        %559 = vmatpush1.msra.mxu0 0.0
        %560 = vmatprep.subr.mxu0 0.0
        %561 = vmatpush1.msra.mxu0 0.0
        %562 = vmatprep.subr.mxu0 0.0
        %563 = vmatpush1.msra.mxu0 0.0
        %564 = vmatprep.subr.mxu0 0.0
        %565 = vmatpush1.msra.mxu0 0.0
        %566 = vmatprep.subr.mxu0 0.0
        %567 = vmatpush1.msra.mxu0 0.0
        %568 = vmatprep.subr.mxu0 0.0
        %569 = vmatpush1.msra.mxu0 0.0
        %570 = vmatprep.subr.mxu0 0.0
        %571 = vmatpush1.msra.mxu0 0.0
        %572 = vmatprep.subr.mxu0 0.0
        %573 = vmatpush1.msra.mxu0 0.0
        %574 = vmatprep.subr.mxu0 0.0
        %575 = vmatpush1.msra.mxu0 0.0
        %576 = vmatprep.subr.mxu0 0.0
        %577 = vmatpush1.msra.mxu0 0.0
        %578 = vmatprep.subr.mxu0 0.0
        %579 = vmatpush1.msra.mxu0 0.0
        %580 = vmatprep.subr.mxu0 0.0
        %581 = vmatpush1.msra.mxu0 0.0
        %582 = vmatprep.subr.mxu0 0.0
        %583 = vmatpush1.msra.mxu0 0.0
        %584 = vmatprep.subr.mxu0 0.0
        %585 = vmatpush1.msra.mxu0 0.0
        %586 = vmatprep.subr.mxu0 0.0
        %587 = vmatpush1.msra.mxu0 0.0
        %588 = vmatprep.subr.mxu0 0.0
        %589 = vmatpush1.msra.mxu0 0.0
        %590 = vmatprep.subr.mxu0 0.0
        %591 = vmatpush1.msra.mxu0 0.0
        %592 = vmatprep.subr.mxu0 0.0
        %593 = vmatpush1.msra.mxu0 0.0
        %594 = vmatprep.mubr.f32.mxu0 0.0
        %595 = vmatmul.mubr.f32.gmra.mrb[0].mxu0 %v528
        %v596 = vpop.f32.mrb[0].mxu0
        %v597 = vadd.f32 0.0, %v596
        %v598 = vpop.f32.mrb[0].mxu0
        %599 = vdwg.mxu0
        %v600 = vadd.f32 %v527, %v597
        %v601 = vxor.u32 %v600, 2147483648
        %v602 = vmul.f32 %v601, 1.442695
        %v603 = vpow.pop %v602
        %v604 = vadd.f32 %v603, 1.0
        %v605 = vrcp.pop %v604
        %v606 = vmul.f32 1.0, %v605
        %v607 = vtanh.pop %v600
        %v608 = vmul.f32 %v606, %v512
        %610 = vrot.lane.b32.xlu0 %v607, 64
        %v611 = vpop.permute.xlu0 %610
        %v613 = vmul.f32 %v606, %v611
        %615 = vrot.lane.b32.xlu0 %v613, 32
        %v616 = vpop.permute.xlu0 %615
        %v618 = vadd.f32 %v608, %v616
        %v619 = vtanh.pop %v618
        %621 = vrot.lane.b32.xlu0 %v619, 64
        %v622 = vpop.permute.xlu0 %621
        %v624 = vmul.f32 %v606, %v622
        %626 = vrot.lane.b32.xlu0 %v624, 32
        %v627 = vpop.permute.xlu0 %626
        %s629 = scalar_lea.vmem [#allocation8], %s525
        %630 = vst.msk [vmem:[%s629] sm:$0x1] %vm523, %v627
        %s631 = sadd.s32 0, 2
        %s632 = scalar_lea.vmem [#allocation2], %s631
        %v633 = vld [vmem:[%s632] sm:$0x1]
        %v634 = vsel %vm420, %v627, 0
        %636 = vmatprep.subr.mxu0 0.0
        %637 = vmatpush1.msra.mxu0 %v320
        %638 = vmatprep.subr.mxu0 0.0
        %639 = vmatpush1.msra.mxu0 %v321
        %640 = vmatprep.subr.mxu0 0.0
        %641 = vmatpush1.msra.mxu0 %v322
        %642 = vmatprep.subr.mxu0 0.0
        %643 = vmatpush1.msra.mxu0 %v323
        %644 = vmatprep.subr.mxu0 0.0
        %645 = vmatpush1.msra.mxu0 0.0
        %646 = vmatprep.subr.mxu0 0.0
        %647 = vmatpush1.msra.mxu0 0.0
        %648 = vmatprep.subr.mxu0 0.0
        %649 = vmatpush1.msra.mxu0 0.0
        %650 = vmatprep.subr.mxu0 0.0
        %651 = vmatpush1.msra.mxu0 0.0
        %652 = vmatprep.subr.mxu0 0.0
        %653 = vmatpush1.msra.mxu0 0.0
        %654 = vmatprep.subr.mxu0 0.0
        %655 = vmatpush1.msra.mxu0 0.0
        %656 = vmatprep.subr.mxu0 0.0
        %657 = vmatpush1.msra.mxu0 0.0
        %658 = vmatprep.subr.mxu0 0.0
        %659 = vmatpush1.msra.mxu0 0.0
        %660 = vmatprep.subr.mxu0 0.0
        %661 = vmatpush1.msra.mxu0 0.0
        %662 = vmatprep.subr.mxu0 0.0
        %663 = vmatpush1.msra.mxu0 0.0
        %664 = vmatprep.subr.mxu0 0.0
        %665 = vmatpush1.msra.mxu0 0.0
        %666 = vmatprep.subr.mxu0 0.0
        %667 = vmatpush1.msra.mxu0 0.0
        %668 = vmatprep.subr.mxu0 0.0
        %669 = vmatpush1.msra.mxu0 0.0
        %670 = vmatprep.subr.mxu0 0.0
        %671 = vmatpush1.msra.mxu0 0.0
        %672 = vmatprep.subr.mxu0 0.0
        %673 = vmatpush1.msra.mxu0 0.0
        %674 = vmatprep.subr.mxu0 0.0
        %675 = vmatpush1.msra.mxu0 0.0
        %676 = vmatprep.subr.mxu0 0.0
        %677 = vmatpush1.msra.mxu0 0.0
        %678 = vmatprep.subr.mxu0 0.0
        %679 = vmatpush1.msra.mxu0 0.0
        %680 = vmatprep.subr.mxu0 0.0
        %681 = vmatpush1.msra.mxu0 0.0
        %682 = vmatprep.subr.mxu0 0.0
        %683 = vmatpush1.msra.mxu0 0.0
        %684 = vmatprep.subr.mxu0 0.0
        %685 = vmatpush1.msra.mxu0 0.0
        %686 = vmatprep.subr.mxu0 0.0
        %687 = vmatpush1.msra.mxu0 0.0
        %688 = vmatprep.subr.mxu0 0.0
        %689 = vmatpush1.msra.mxu0 0.0
        %690 = vmatprep.subr.mxu0 0.0
        %691 = vmatpush1.msra.mxu0 0.0
        %692 = vmatprep.subr.mxu0 0.0
        %693 = vmatpush1.msra.mxu0 0.0
        %694 = vmatprep.subr.mxu0 0.0
        %695 = vmatpush1.msra.mxu0 0.0
        %696 = vmatprep.subr.mxu0 0.0
        %697 = vmatpush1.msra.mxu0 0.0
        %698 = vmatprep.subr.mxu0 0.0
        %699 = vmatpush1.msra.mxu0 0.0
        %700 = vmatprep.mubr.f32.mxu0 0.0
        %701 = vmatmul.mubr.f32.gmra.mrb[0].mxu0 %v634
        %v702 = vpop.f32.mrb[0].mxu0
        %v703 = vadd.f32 0.0, %v702
        %v704 = vpop.f32.mrb[0].mxu0
        %705 = vdwg.mxu0
        %v706 = vadd.f32 %v633, %v703
        %v707 = vxor.u32 %v706, 2147483648
        %v708 = vmul.f32 %v707, 1.442695
        %v709 = vpow.pop %v708
        %v710 = vadd.f32 %v709, 1.0
        %v711 = vrcp.pop %v710
        %v712 = vmul.f32 1.0, %v711
        %v713 = vtanh.pop %v706
        %v714 = vmul.f32 %v712, %v618
        %716 = vrot.lane.b32.xlu0 %v713, 64
        %v717 = vpop.permute.xlu0 %716
        %v719 = vmul.f32 %v712, %v717
        %721 = vrot.lane.b32.xlu0 %v719, 32
        %v722 = vpop.permute.xlu0 %721
        %v724 = vadd.f32 %v714, %v722
        %v725 = vtanh.pop %v724
        %727 = vrot.lane.b32.xlu0 %v725, 64
        %v728 = vpop.permute.xlu0 %727
        %v730 = vmul.f32 %v712, %v728
        %732 = vrot.lane.b32.xlu0 %v730, 32
        %v733 = vpop.permute.xlu0 %732
        %s735 = scalar_lea.vmem [#allocation8], %s631
        %736 = vst.msk [vmem:[%s735] sm:$0x1] %vm523, %v733
        %s737 = sadd.s32 0, 3
        %s738 = scalar_lea.vmem [#allocation2], %s737
        %v739 = vld [vmem:[%s738] sm:$0x1]
        %v740 = vsel %vm420, %v733, 0
        %742 = vmatprep.subr.mxu0 0.0
        %743 = vmatpush1.msra.mxu0 %v320
        %744 = vmatprep.subr.mxu0 0.0
        %745 = vmatpush1.msra.mxu0 %v321
        %746 = vmatprep.subr.mxu0 0.0
        %747 = vmatpush1.msra.mxu0 %v322
        %748 = vmatprep.subr.mxu0 0.0
        %749 = vmatpush1.msra.mxu0 %v323
        %750 = vmatprep.subr.mxu0 0.0
        %751 = vmatpush1.msra.mxu0 0.0
        %752 = vmatprep.subr.mxu0 0.0
        %753 = vmatpush1.msra.mxu0 0.0
        %754 = vmatprep.subr.mxu0 0.0
        %755 = vmatpush1.msra.mxu0 0.0
        %756 = vmatprep.subr.mxu0 0.0
        %757 = vmatpush1.msra.mxu0 0.0
        %758 = vmatprep.subr.mxu0 0.0
        %759 = vmatpush1.msra.mxu0 0.0
        %760 = vmatprep.subr.mxu0 0.0
        %761 = vmatpush1.msra.mxu0 0.0
        %762 = vmatprep.subr.mxu0 0.0
        %763 = vmatpush1.msra.mxu0 0.0
        %764 = vmatprep.subr.mxu0 0.0
        %765 = vmatpush1.msra.mxu0 0.0
        %766 = vmatprep.subr.mxu0 0.0
        %767 = vmatpush1.msra.mxu0 0.0
        %768 = vmatprep.subr.mxu0 0.0
        %769 = vmatpush1.msra.mxu0 0.0
        %770 = vmatprep.subr.mxu0 0.0
        %771 = vmatpush1.msra.mxu0 0.0
        %772 = vmatprep.subr.mxu0 0.0
        %773 = vmatpush1.msra.mxu0 0.0
        %774 = vmatprep.subr.mxu0 0.0
        %775 = vmatpush1.msra.mxu0 0.0
        %776 = vmatprep.subr.mxu0 0.0
        %777 = vmatpush1.msra.mxu0 0.0
        %778 = vmatprep.subr.mxu0 0.0
        %779 = vmatpush1.msra.mxu0 0.0
        %780 = vmatprep.subr.mxu0 0.0
        %781 = vmatpush1.msra.mxu0 0.0
        %782 = vmatprep.subr.mxu0 0.0
        %783 = vmatpush1.msra.mxu0 0.0
        %784 = vmatprep.subr.mxu0 0.0
        %785 = vmatpush1.msra.mxu0 0.0
        %786 = vmatprep.subr.mxu0 0.0
        %787 = vmatpush1.msra.mxu0 0.0
        %788 = vmatprep.subr.mxu0 0.0
        %789 = vmatpush1.msra.mxu0 0.0
        %790 = vmatprep.subr.mxu0 0.0
        %791 = vmatpush1.msra.mxu0 0.0
        %792 = vmatprep.subr.mxu0 0.0
        %793 = vmatpush1.msra.mxu0 0.0
        %794 = vmatprep.subr.mxu0 0.0
        %795 = vmatpush1.msra.mxu0 0.0
        %796 = vmatprep.subr.mxu0 0.0
        %797 = vmatpush1.msra.mxu0 0.0
        %798 = vmatprep.subr.mxu0 0.0
        %799 = vmatpush1.msra.mxu0 0.0
        %800 = vmatprep.subr.mxu0 0.0
        %801 = vmatpush1.msra.mxu0 0.0
        %802 = vmatprep.subr.mxu0 0.0
        %803 = vmatpush1.msra.mxu0 0.0
        %804 = vmatprep.subr.mxu0 0.0
        %805 = vmatpush1.msra.mxu0 0.0
        %806 = vmatprep.mubr.f32.mxu0 0.0
        %807 = vmatmul.mubr.f32.gmra.mrb[0].mxu0 %v740
        %v808 = vpop.f32.mrb[0].mxu0
        %v809 = vadd.f32 0.0, %v808
        %v810 = vpop.f32.mrb[0].mxu0
        %811 = vdwg.mxu0
        %v812 = vadd.f32 %v739, %v809
        %v813 = vxor.u32 %v812, 2147483648
        %v814 = vmul.f32 %v813, 1.442695
        %v815 = vpow.pop %v814
        %v816 = vadd.f32 %v815, 1.0
        %v817 = vrcp.pop %v816
        %v818 = vmul.f32 1.0, %v817
        %v819 = vtanh.pop %v812
        %v820 = vmul.f32 %v818, %v724
        %822 = vrot.lane.b32.xlu0 %v819, 64
        %v823 = vpop.permute.xlu0 %822
        %v825 = vmul.f32 %v818, %v823
        %827 = vrot.lane.b32.xlu0 %v825, 32
        %v828 = vpop.permute.xlu0 %827
        %v830 = vadd.f32 %v820, %v828
        %v831 = vtanh.pop %v830
        %833 = vrot.lane.b32.xlu0 %v831, 64
        %v834 = vpop.permute.xlu0 %833
        %v836 = vmul.f32 %v818, %v834
        %838 = vrot.lane.b32.xlu0 %v836, 32
        %v839 = vpop.permute.xlu0 %838
        %s841 = scalar_lea.vmem [#allocation8], %s737
        %842 = vst.msk [vmem:[%s841] sm:$0x1] %vm523, %v839
        %s843 = sadd.s32 0, 4
        %s844 = scalar_lea.vmem [#allocation2], %s843
        %v845 = vld [vmem:[%s844] sm:$0x1]
        %v846 = vsel %vm420, %v839, 0
        %848 = vmatprep.subr.mxu0 0.0
        %849 = vmatpush1.msra.mxu0 %v320
        %850 = vmatprep.subr.mxu0 0.0
        %851 = vmatpush1.msra.mxu0 %v321
        %852 = vmatprep.subr.mxu0 0.0
        %853 = vmatpush1.msra.mxu0 %v322
        %854 = vmatprep.subr.mxu0 0.0
        %855 = vmatpush1.msra.mxu0 %v323
        %856 = vmatprep.subr.mxu0 0.0
        %857 = vmatpush1.msra.mxu0 0.0
        %858 = vmatprep.subr.mxu0 0.0
        %859 = vmatpush1.msra.mxu0 0.0
        %860 = vmatprep.subr.mxu0 0.0
        %861 = vmatpush1.msra.mxu0 0.0
        %862 = vmatprep.subr.mxu0 0.0
        %863 = vmatpush1.msra.mxu0 0.0
        %864 = vmatprep.subr.mxu0 0.0
        %865 = vmatpush1.msra.mxu0 0.0
        %866 = vmatprep.subr.mxu0 0.0
        %867 = vmatpush1.msra.mxu0 0.0
        %868 = vmatprep.subr.mxu0 0.0
        %869 = vmatpush1.msra.mxu0 0.0
        %870 = vmatprep.subr.mxu0 0.0
        %871 = vmatpush1.msra.mxu0 0.0
        %872 = vmatprep.subr.mxu0 0.0
        %873 = vmatpush1.msra.mxu0 0.0
        %874 = vmatprep.subr.mxu0 0.0
        %875 = vmatpush1.msra.mxu0 0.0
        %876 = vmatprep.subr.mxu0 0.0
        %877 = vmatpush1.msra.mxu0 0.0
        %878 = vmatprep.subr.mxu0 0.0
        %879 = vmatpush1.msra.mxu0 0.0
        %880 = vmatprep.subr.mxu0 0.0
        %881 = vmatpush1.msra.mxu0 0.0
        %882 = vmatprep.subr.mxu0 0.0
        %883 = vmatpush1.msra.mxu0 0.0
        %884 = vmatprep.subr.mxu0 0.0
        %885 = vmatpush1.msra.mxu0 0.0
        %886 = vmatprep.subr.mxu0 0.0
        %887 = vmatpush1.msra.mxu0 0.0
        %888 = vmatprep.subr.mxu0 0.0
        %889 = vmatpush1.msra.mxu0 0.0
        %890 = vmatprep.subr.mxu0 0.0
        %891 = vmatpush1.msra.mxu0 0.0
        %892 = vmatprep.subr.mxu0 0.0
        %893 = vmatpush1.msra.mxu0 0.0
        %894 = vmatprep.subr.mxu0 0.0
        %895 = vmatpush1.msra.mxu0 0.0
        %896 = vmatprep.subr.mxu0 0.0
        %897 = vmatpush1.msra.mxu0 0.0
        %898 = vmatprep.subr.mxu0 0.0
        %899 = vmatpush1.msra.mxu0 0.0
        %900 = vmatprep.subr.mxu0 0.0
        %901 = vmatpush1.msra.mxu0 0.0
        %902 = vmatprep.subr.mxu0 0.0
        %903 = vmatpush1.msra.mxu0 0.0
        %904 = vmatprep.subr.mxu0 0.0
        %905 = vmatpush1.msra.mxu0 0.0
        %906 = vmatprep.subr.mxu0 0.0
        %907 = vmatpush1.msra.mxu0 0.0
        %908 = vmatprep.subr.mxu0 0.0
        %909 = vmatpush1.msra.mxu0 0.0
        %910 = vmatprep.subr.mxu0 0.0
        %911 = vmatpush1.msra.mxu0 0.0
        %912 = vmatprep.mubr.f32.mxu0 0.0
        %913 = vmatmul.mubr.f32.gmra.mrb[0].mxu0 %v846
        %v914 = vpop.f32.mrb[0].mxu0
        %v915 = vadd.f32 0.0, %v914
        %v916 = vpop.f32.mrb[0].mxu0
        %917 = vdwg.mxu0
        %v918 = vadd.f32 %v845, %v915
        %v919 = vxor.u32 %v918, 2147483648
        %v920 = vmul.f32 %v919, 1.442695
        %v921 = vpow.pop %v920
        %v922 = vadd.f32 %v921, 1.0
        %v923 = vrcp.pop %v922
        %v924 = vmul.f32 1.0, %v923
        %v925 = vtanh.pop %v918
        %v926 = vmul.f32 %v924, %v830
        %928 = vrot.lane.b32.xlu0 %v925, 64
        %v929 = vpop.permute.xlu0 %928
        %v931 = vmul.f32 %v924, %v929
        %933 = vrot.lane.b32.xlu0 %v931, 32
        %v934 = vpop.permute.xlu0 %933
        %v936 = vadd.f32 %v926, %v934
        %v937 = vtanh.pop %v936
        %939 = vrot.lane.b32.xlu0 %v937, 64
        %v940 = vpop.permute.xlu0 %939
        %v942 = vmul.f32 %v924, %v940
        %944 = vrot.lane.b32.xlu0 %v942, 32
        %v945 = vpop.permute.xlu0 %944
        %s947 = scalar_lea.vmem [#allocation8], %s843
        %948 = vst.msk [vmem:[%s947] sm:$0x1] %vm523, %v945
        %s949 = sadd.s32 0, 5
        %s950 = scalar_lea.vmem [#allocation2], %s949
        %v951 = vld [vmem:[%s950] sm:$0x1]
        %v952 = vsel %vm420, %v945, 0
        %954 = vmatprep.subr.mxu0 0.0
        %955 = vmatpush1.msra.mxu0 %v320
        %956 = vmatprep.subr.mxu0 0.0
        %957 = vmatpush1.msra.mxu0 %v321
        %958 = vmatprep.subr.mxu0 0.0
        %959 = vmatpush1.msra.mxu0 %v322
        %960 = vmatprep.subr.mxu0 0.0
        %961 = vmatpush1.msra.mxu0 %v323
        %962 = vmatprep.subr.mxu0 0.0
        %963 = vmatpush1.msra.mxu0 0.0
        %964 = vmatprep.subr.mxu0 0.0
        %965 = vmatpush1.msra.mxu0 0.0
        %966 = vmatprep.subr.mxu0 0.0
        %967 = vmatpush1.msra.mxu0 0.0
        %968 = vmatprep.subr.mxu0 0.0
        %969 = vmatpush1.msra.mxu0 0.0
        %970 = vmatprep.subr.mxu0 0.0
        %971 = vmatpush1.msra.mxu0 0.0
        %972 = vmatprep.subr.mxu0 0.0
        %973 = vmatpush1.msra.mxu0 0.0
        %974 = vmatprep.subr.mxu0 0.0
        %975 = vmatpush1.msra.mxu0 0.0
        %976 = vmatprep.subr.mxu0 0.0
        %977 = vmatpush1.msra.mxu0 0.0
        %978 = vmatprep.subr.mxu0 0.0
        %979 = vmatpush1.msra.mxu0 0.0
        %980 = vmatprep.subr.mxu0 0.0
        %981 = vmatpush1.msra.mxu0 0.0
        %982 = vmatprep.subr.mxu0 0.0
        %983 = vmatpush1.msra.mxu0 0.0
        %984 = vmatprep.subr.mxu0 0.0
        %985 = vmatpush1.msra.mxu0 0.0
        %986 = vmatprep.subr.mxu0 0.0
        %987 = vmatpush1.msra.mxu0 0.0
        %988 = vmatprep.subr.mxu0 0.0
        %989 = vmatpush1.msra.mxu0 0.0
        %990 = vmatprep.subr.mxu0 0.0
        %991 = vmatpush1.msra.mxu0 0.0
        %992 = vmatprep.subr.mxu0 0.0
        %993 = vmatpush1.msra.mxu0 0.0
        %994 = vmatprep.subr.mxu0 0.0
        %995 = vmatpush1.msra.mxu0 0.0
        %996 = vmatprep.subr.mxu0 0.0
        %997 = vmatpush1.msra.mxu0 0.0
        %998 = vmatprep.subr.mxu0 0.0
        %999 = vmatpush1.msra.mxu0 0.0
        %1000 = vmatprep.subr.mxu0 0.0
        %1001 = vmatpush1.msra.mxu0 0.0
        %1002 = vmatprep.subr.mxu0 0.0
        %1003 = vmatpush1.msra.mxu0 0.0
        %1004 = vmatprep.subr.mxu0 0.0
        %1005 = vmatpush1.msra.mxu0 0.0
        %1006 = vmatprep.subr.mxu0 0.0
        %1007 = vmatpush1.msra.mxu0 0.0
        %1008 = vmatprep.subr.mxu0 0.0
        %1009 = vmatpush1.msra.mxu0 0.0
        %1010 = vmatprep.subr.mxu0 0.0
        %1011 = vmatpush1.msra.mxu0 0.0
        %1012 = vmatprep.subr.mxu0 0.0
        %1013 = vmatpush1.msra.mxu0 0.0
        %1014 = vmatprep.subr.mxu0 0.0
        %1015 = vmatpush1.msra.mxu0 0.0
        %1016 = vmatprep.subr.mxu0 0.0
        %1017 = vmatpush1.msra.mxu0 0.0
        %1018 = vmatprep.mubr.f32.mxu0 0.0
        %1019 = vmatmul.mubr.f32.gmra.mrb[0].mxu0 %v952
        %v1020 = vpop.f32.mrb[0].mxu0
        %v1021 = vadd.f32 0.0, %v1020
        %v1022 = vpop.f32.mrb[0].mxu0
        %1023 = vdwg.mxu0
        %v1024 = vadd.f32 %v951, %v1021
        %v1025 = vxor.u32 %v1024, 2147483648
        %v1026 = vmul.f32 %v1025, 1.442695
        %v1027 = vpow.pop %v1026
        %v1028 = vadd.f32 %v1027, 1.0
        %v1029 = vrcp.pop %v1028
        %v1030 = vmul.f32 1.0, %v1029
        %v1031 = vtanh.pop %v1024
        %v1032 = vmul.f32 %v1030, %v936
        %1034 = vrot.lane.b32.xlu0 %v1031, 64
        %v1035 = vpop.permute.xlu0 %1034
        %v1037 = vmul.f32 %v1030, %v1035
        %1039 = vrot.lane.b32.xlu0 %v1037, 32
        %v1040 = vpop.permute.xlu0 %1039
        %v1042 = vadd.f32 %v1032, %v1040
        %v1043 = vtanh.pop %v1042
        %1045 = vrot.lane.b32.xlu0 %v1043, 64
        %v1046 = vpop.permute.xlu0 %1045
        %v1048 = vmul.f32 %v1030, %v1046
        %1050 = vrot.lane.b32.xlu0 %v1048, 32
        %v1051 = vpop.permute.xlu0 %1050
        %s1053 = scalar_lea.vmem [#allocation8], %s949
        %1054 = vst.msk [vmem:[%s1053] sm:$0x1] %vm523, %v1051
        %s1055 = sadd.s32 0, 6
        %s1056 = scalar_lea.vmem [#allocation2], %s1055
        %v1057 = vld [vmem:[%s1056] sm:$0x1]
        %v1058 = vsel %vm420, %v1051, 0
        %1060 = vmatprep.subr.mxu0 0.0
        %1061 = vmatpush1.msra.mxu0 %v320
        %1062 = vmatprep.subr.mxu0 0.0
        %1063 = vmatpush1.msra.mxu0 %v321
        %1064 = vmatprep.subr.mxu0 0.0
        %1065 = vmatpush1.msra.mxu0 %v322
        %1066 = vmatprep.subr.mxu0 0.0
        %1067 = vmatpush1.msra.mxu0 %v323
        %1068 = vmatprep.subr.mxu0 0.0
        %1069 = vmatpush1.msra.mxu0 0.0
        %1070 = vmatprep.subr.mxu0 0.0
        %1071 = vmatpush1.msra.mxu0 0.0
        %1072 = vmatprep.subr.mxu0 0.0
        %1073 = vmatpush1.msra.mxu0 0.0
        %1074 = vmatprep.subr.mxu0 0.0
        %1075 = vmatpush1.msra.mxu0 0.0
        %1076 = vmatprep.subr.mxu0 0.0
        %1077 = vmatpush1.msra.mxu0 0.0
        %1078 = vmatprep.subr.mxu0 0.0
        %1079 = vmatpush1.msra.mxu0 0.0
        %1080 = vmatprep.subr.mxu0 0.0
        %1081 = vmatpush1.msra.mxu0 0.0
        %1082 = vmatprep.subr.mxu0 0.0
        %1083 = vmatpush1.msra.mxu0 0.0
        %1084 = vmatprep.subr.mxu0 0.0
        %1085 = vmatpush1.msra.mxu0 0.0
        %1086 = vmatprep.subr.mxu0 0.0
        %1087 = vmatpush1.msra.mxu0 0.0
        %1088 = vmatprep.subr.mxu0 0.0
        %1089 = vmatpush1.msra.mxu0 0.0
        %1090 = vmatprep.subr.mxu0 0.0
        %1091 = vmatpush1.msra.mxu0 0.0
        %1092 = vmatprep.subr.mxu0 0.0
        %1093 = vmatpush1.msra.mxu0 0.0
        %1094 = vmatprep.subr.mxu0 0.0
        %1095 = vmatpush1.msra.mxu0 0.0
        %1096 = vmatprep.subr.mxu0 0.0
        %1097 = vmatpush1.msra.mxu0 0.0
        %1098 = vmatprep.subr.mxu0 0.0
        %1099 = vmatpush1.msra.mxu0 0.0
        %1100 = vmatprep.subr.mxu0 0.0
        %1101 = vmatpush1.msra.mxu0 0.0
        %1102 = vmatprep.subr.mxu0 0.0
        %1103 = vmatpush1.msra.mxu0 0.0
        %1104 = vmatprep.subr.mxu0 0.0
        %1105 = vmatpush1.msra.mxu0 0.0
        %1106 = vmatprep.subr.mxu0 0.0
        %1107 = vmatpush1.msra.mxu0 0.0
        %1108 = vmatprep.subr.mxu0 0.0
        %1109 = vmatpush1.msra.mxu0 0.0
        %1110 = vmatprep.subr.mxu0 0.0
        %1111 = vmatpush1.msra.mxu0 0.0
        %1112 = vmatprep.subr.mxu0 0.0
        %1113 = vmatpush1.msra.mxu0 0.0
        %1114 = vmatprep.subr.mxu0 0.0
        %1115 = vmatpush1.msra.mxu0 0.0
        %1116 = vmatprep.subr.mxu0 0.0
        %1117 = vmatpush1.msra.mxu0 0.0
        %1118 = vmatprep.subr.mxu0 0.0
        %1119 = vmatpush1.msra.mxu0 0.0
        %1120 = vmatprep.subr.mxu0 0.0
        %1121 = vmatpush1.msra.mxu0 0.0
        %1122 = vmatprep.subr.mxu0 0.0
        %1123 = vmatpush1.msra.mxu0 0.0
        %1124 = vmatprep.mubr.f32.mxu0 0.0
        %1125 = vmatmul.mubr.f32.gmra.mrb[0].mxu0 %v1058
        %v1126 = vpop.f32.mrb[0].mxu0
        %v1127 = vadd.f32 0.0, %v1126
        %v1128 = vpop.f32.mrb[0].mxu0
        %1129 = vdwg.mxu0
        %v1130 = vadd.f32 %v1057, %v1127
        %v1131 = vxor.u32 %v1130, 2147483648
        %v1132 = vmul.f32 %v1131, 1.442695
        %v1133 = vpow.pop %v1132
        %v1134 = vadd.f32 %v1133, 1.0
        %v1135 = vrcp.pop %v1134
        %v1136 = vmul.f32 1.0, %v1135
        %v1137 = vtanh.pop %v1130
        %v1138 = vmul.f32 %v1136, %v1042
        %1140 = vrot.lane.b32.xlu0 %v1137, 64
        %v1141 = vpop.permute.xlu0 %1140
        %v1143 = vmul.f32 %v1136, %v1141
        %1145 = vrot.lane.b32.xlu0 %v1143, 32
        %v1146 = vpop.permute.xlu0 %1145
        %v1148 = vadd.f32 %v1138, %v1146
        %v1149 = vtanh.pop %v1148
        %1151 = vrot.lane.b32.xlu0 %v1149, 64
        %v1152 = vpop.permute.xlu0 %1151
        %v1154 = vmul.f32 %v1136, %v1152
        %1156 = vrot.lane.b32.xlu0 %v1154, 32
        %v1157 = vpop.permute.xlu0 %1156
        %s1159 = scalar_lea.vmem [#allocation8], %s1055
        %1160 = vst.msk [vmem:[%s1159] sm:$0x1] %vm523, %v1157
        %s1161 = sadd.s32 0, 7
        %s1162 = scalar_lea.vmem [#allocation2], %s1161
        %v1163 = vld [vmem:[%s1162] sm:$0x1]
        %v1164 = vsel %vm420, %v1157, 0
        %1166 = vmatprep.subr.mxu0 0.0
        %1167 = vmatpush1.msra.mxu0 %v320
        %1168 = vmatprep.subr.mxu0 0.0
        %1169 = vmatpush1.msra.mxu0 %v321
        %1170 = vmatprep.subr.mxu0 0.0
        %1171 = vmatpush1.msra.mxu0 %v322
        %1172 = vmatprep.subr.mxu0 0.0
        %1173 = vmatpush1.msra.mxu0 %v323
        %1174 = vmatprep.subr.mxu0 0.0
        %1175 = vmatpush1.msra.mxu0 0.0
        %1176 = vmatprep.subr.mxu0 0.0
        %1177 = vmatpush1.msra.mxu0 0.0
        %1178 = vmatprep.subr.mxu0 0.0
        %1179 = vmatpush1.msra.mxu0 0.0
        %1180 = vmatprep.subr.mxu0 0.0
        %1181 = vmatpush1.msra.mxu0 0.0
        %1182 = vmatprep.subr.mxu0 0.0
        %1183 = vmatpush1.msra.mxu0 0.0
        %1184 = vmatprep.subr.mxu0 0.0
        %1185 = vmatpush1.msra.mxu0 0.0
        %1186 = vmatprep.subr.mxu0 0.0
        %1187 = vmatpush1.msra.mxu0 0.0
        %1188 = vmatprep.subr.mxu0 0.0
        %1189 = vmatpush1.msra.mxu0 0.0
        %1190 = vmatprep.subr.mxu0 0.0
        %1191 = vmatpush1.msra.mxu0 0.0
        %1192 = vmatprep.subr.mxu0 0.0
        %1193 = vmatpush1.msra.mxu0 0.0
        %1194 = vmatprep.subr.mxu0 0.0
        %1195 = vmatpush1.msra.mxu0 0.0
        %1196 = vmatprep.subr.mxu0 0.0
        %1197 = vmatpush1.msra.mxu0 0.0
        %1198 = vmatprep.subr.mxu0 0.0
        %1199 = vmatpush1.msra.mxu0 0.0
        %1200 = vmatprep.subr.mxu0 0.0
        %1201 = vmatpush1.msra.mxu0 0.0
        %1202 = vmatprep.subr.mxu0 0.0
        %1203 = vmatpush1.msra.mxu0 0.0
        %1204 = vmatprep.subr.mxu0 0.0
        %1205 = vmatpush1.msra.mxu0 0.0
        %1206 = vmatprep.subr.mxu0 0.0
        %1207 = vmatpush1.msra.mxu0 0.0
        %1208 = vmatprep.subr.mxu0 0.0
        %1209 = vmatpush1.msra.mxu0 0.0
        %1210 = vmatprep.subr.mxu0 0.0
        %1211 = vmatpush1.msra.mxu0 0.0
        %1212 = vmatprep.subr.mxu0 0.0
        %1213 = vmatpush1.msra.mxu0 0.0
        %1214 = vmatprep.subr.mxu0 0.0
        %1215 = vmatpush1.msra.mxu0 0.0
        %1216 = vmatprep.subr.mxu0 0.0
        %1217 = vmatpush1.msra.mxu0 0.0
        %1218 = vmatprep.subr.mxu0 0.0
        %1219 = vmatpush1.msra.mxu0 0.0
        %1220 = vmatprep.subr.mxu0 0.0
        %1221 = vmatpush1.msra.mxu0 0.0
        %1222 = vmatprep.subr.mxu0 0.0
        %1223 = vmatpush1.msra.mxu0 0.0
        %1224 = vmatprep.subr.mxu0 0.0
        %1225 = vmatpush1.msra.mxu0 0.0
        %1226 = vmatprep.subr.mxu0 0.0
        %1227 = vmatpush1.msra.mxu0 0.0
        %1228 = vmatprep.subr.mxu0 0.0
        %1229 = vmatpush1.msra.mxu0 0.0
        %1230 = vmatprep.mubr.f32.mxu0 0.0
        %1231 = vmatmul.mubr.f32.gmra.mrb[0].mxu0 %v1164
        %v1232 = vpop.f32.mrb[0].mxu0
        %v1233 = vadd.f32 0.0, %v1232
        %v1234 = vpop.f32.mrb[0].mxu0
        %1235 = vdwg.mxu0
        %v1236 = vadd.f32 %v1163, %v1233
        %v1237 = vxor.u32 %v1236, 2147483648
        %v1238 = vmul.f32 %v1237, 1.442695
        %v1239 = vpow.pop %v1238
        %v1240 = vadd.f32 %v1239, 1.0
        %v1241 = vrcp.pop %v1240
        %v1242 = vmul.f32 1.0, %v1241
        %v1243 = vtanh.pop %v1236
        %v1244 = vmul.f32 %v1242, %v1148
        %1246 = vrot.lane.b32.xlu0 %v1243, 64
        %v1247 = vpop.permute.xlu0 %1246
        %v1249 = vmul.f32 %v1242, %v1247
        %1251 = vrot.lane.b32.xlu0 %v1249, 32
        %v1252 = vpop.permute.xlu0 %1251
        %v1254 = vadd.f32 %v1244, %v1252
        %v1255 = vtanh.pop %v1254
        %1257 = vrot.lane.b32.xlu0 %v1255, 64
        %v1258 = vpop.permute.xlu0 %1257
        %v1260 = vmul.f32 %v1242, %v1258
        %1262 = vrot.lane.b32.xlu0 %v1260, 32
        %v1263 = vpop.permute.xlu0 %1262
        %s1265 = scalar_lea.vmem [#allocation8], %s1161
        %1266 = vst.msk [vmem:[%s1265] sm:$0x1] %vm523, %v1263
        %1267 = vst.msk [vmem:[%s292] sm:$0x1] %vm523, %v1263
        %1269 = vrot.lane.b32.xlu0 %v1254, 96
        %v1270 = vpop.permute.xlu0 %1269
        %1272 = vst.msk [vmem:[%s298] sm:$0x1] %vm523, %v1270
        %s1273 = sand.u32 %s28, 1
        %s1274 = scalar_lea.sflag [#allocation10], %s1273
        %s1275 = sand.u32 %s135, 1
        %s1276 = scalar_lea.vmem [#allocation9], %s1275
        %s1277 = sand.u32 %s28, 1
        %s1278 = scalar_lea.sflag [#allocation10], %s1277
        %s1279 = sand.u32 %s161, 1
        %s1280 = scalar_lea.vmem [#allocation11], %s1279
        // Predicated region
        $region50: #{tpu_custom_call.1} parent=31 // pred_check
          %p1281 = pneg %p119
        $region51: #{tpu_custom_call.1} parent=31 // pred_check_branch
          %1283 = sbr.rel (%p1281) target = $region53
        $region52: #{tpu_custom_call.1} parent=31 // pred_region
          %s1285 = ssub.s32 128, 128
          %1286 = vsyncadd [#allocation5], %s1285
          %s1288 = sshll.u32 [#allocation8], 4
          %s1289 = int_to_ptr.vmem [resolvable:$true] %s1288
          %1291 = dma.vmem_to_hbm [thread:$0]  %s1289, 128, %s4, [#allocation5]
        $region53: #{tpu_custom_call.1} parent=31 // pred_fallthru
          _
        // Predicated region
        $region54: #{tpu_custom_call.1} parent=31 // pred_check
          %p1292 = pneg %p145
        $region55: #{tpu_custom_call.1} parent=31 // pred_check_branch
          %1294 = sbr.rel (%p1292) target = $region57
        $region56: #{tpu_custom_call.1} parent=31 // pred_region
          %s1296 = ssub.s32 16, 16
          %1297 = vsyncadd %s1274, %s1296
          %s1298 = smul.addr %s28, 16
          %s1299 = scalar_lea.hbm %s5, %s1298
          %s1301 = sshll.u32 %s1276, 4
          %s1302 = int_to_ptr.vmem [resolvable:$true] %s1301
          %1304 = dma.vmem_to_hbm [thread:$0]  %s1302, 16, %s1299, %s1274
        $region57: #{tpu_custom_call.1} parent=31 // pred_fallthru
          _
        // Predicated region
        $region58: #{tpu_custom_call.1} parent=31 // pred_check
          %p1305 = pneg %p171
        $region59: #{tpu_custom_call.1} parent=31 // pred_check_branch
          %1307 = sbr.rel (%p1305) target = $region61
        $region60: #{tpu_custom_call.1} parent=31 // pred_region
          %s1309 = ssub.s32 16, 16
          %1310 = vsyncadd %s1278, %s1309
          %s1311 = smul.addr %s28, 16
          %s1312 = scalar_lea.hbm %s6, %s1311
          %s1314 = sshll.u32 %s1280, 4
          %s1315 = int_to_ptr.vmem [resolvable:$true] %s1314
          %1317 = dma.vmem_to_hbm [thread:$0]  %s1315, 16, %s1312, %s1278
        $region61: #{tpu_custom_call.1} parent=31 // pred_fallthru
          _
        // Predicated region
        $region62: #{tpu_custom_call.1} parent=31 // pred_check
          %p1318 = pneg %p119
        $region63: #{tpu_custom_call.1} parent=31 // pred_check_branch
          %1320 = sbr.rel (%p1318) target = $region65
        $region64: #{tpu_custom_call.1} parent=31 // pred_region
          %1321 = dma.done [#allocation5], 128
        $region65: #{tpu_custom_call.1} parent=31 // pred_fallthru
          _
      $region32: #{tpu_custom_call.1} parent=5 // pred_fallthru
        _
      %p1322 = scmp.le.s32.totalorder 2, %s23
      // Predicated region
      $region66: #{tpu_custom_call.1} parent=5 // pred_check
        %p1323 = pneg %p1322
      $region67: #{tpu_custom_call.1} parent=5 // pred_check_branch
        %1325 = sbr.rel (%p1323) target = $region69
      $region68: #{tpu_custom_call.1} parent=5 // pred_region
        %s1326 = ssub.s32 %s23, 2
        // Predicated region
        $region70: #{tpu_custom_call.1} parent=68 // pred_check
          %p1327 = pneg %p151
        $region71: #{tpu_custom_call.1} parent=68 // pred_check_branch
          %1329 = sbr.rel (%p1327) target = $region73
        $region72: #{tpu_custom_call.1} parent=68 // pred_region
          %s1330 = sand.u32 %s29, 1
          %s1331 = scalar_lea.sflag [#allocation10], %s1330
          %s1332 = sand.u32 %s136, 1
          %s1333 = scalar_lea.vmem [#allocation9], %s1332
          %1334 = dma.done %s1331, 16
        $region73: #{tpu_custom_call.1} parent=68 // pred_fallthru
          _
        // Predicated region
        $region74: #{tpu_custom_call.1} parent=68 // pred_check
          %p1335 = pneg %p177
        $region75: #{tpu_custom_call.1} parent=68 // pred_check_branch
          %1337 = sbr.rel (%p1335) target = $region77
        $region76: #{tpu_custom_call.1} parent=68 // pred_region
          %s1338 = sand.u32 %s29, 1
          %s1339 = scalar_lea.sflag [#allocation10], %s1338
          %s1340 = sand.u32 %s162, 1
          %s1341 = scalar_lea.vmem [#allocation11], %s1340
          %1342 = dma.done %s1339, 16
        $region77: #{tpu_custom_call.1} parent=68 // pred_fallthru
          _
      $region69: #{tpu_custom_call.1} parent=5 // pred_fallthru
        _
    $region6: #{tpu_custom_call.1} parent=1 // loop_footer
      %s27 = sadd.s32 1, %s23
    $region7: #{tpu_custom_call.1} parent=1 // loop_footer_branch
      %22 = sbr.rel target = $region3
    $region8: #{tpu_custom_call.1} parent=1 // loop_exit
      _
    %1343 = vsyncpa [#allocation4], 1
    %s1344 = scalar_lea.sflag [#allocation4], 1
    %1345 = vsyncpa %s1344, 1
    %1346 = vsyncpa [#allocation7], 1
    %s1347 = scalar_lea.sflag [#allocation7], 1
    %1348 = vsyncpa %s1347, 1
    %1349 = vsyncpa [#allocation5], 1
    %s1350 = scalar_lea.sflag [#allocation5], 1
    %1351 = vsyncpa %s1350, 1
    %1352 = vsyncpa [#allocation10], 1
    %s1353 = scalar_lea.sflag [#allocation10], 1
    %1354 = vsyncpa %s1353, 1

</llo_original>
